<compile_context>
chip_gen: v7x
topology: tpu7x:2x2x1
jax: 0.10.0
libtpu: 0.0.40
codegen_flags: <defaults>
</compile_context>

<pallas_src>
import jax
import jax.numpy as jnp
from jax.experimental import pallas as pl
from jax.experimental.pallas import tpu as pltpu


# ---------------------------------------------------------------------------
# Host-side helpers (pure layout / constant precompute, not the hot path)
# ---------------------------------------------------------------------------
def _bilinear_matrix(in_size: int, out_size: int, dtype=jnp.float32):
    """R of shape (out_size, in_size): y = R @ x matches F.interpolate
    (mode='bilinear', align_corners=False) along one axis."""
    scale = in_size / out_size
    src = jnp.maximum((jnp.arange(out_size, dtype=jnp.float32) + 0.5) * scale - 0.5, 0.0)
    i0 = jnp.floor(src).astype(jnp.int32)
    i1 = jnp.minimum(i0 + 1, in_size - 1)
    w1 = (src - i0.astype(jnp.float32)).astype(dtype)
    w0 = (1.0 - w1).astype(dtype)
    oh0 = jax.nn.one_hot(i0, in_size, dtype=dtype)
    oh1 = jax.nn.one_hot(i1, in_size, dtype=dtype)
    return oh0 * w0[:, None] + oh1 * w1[:, None]


def _fuse_conv_bn(w, gamma, beta, mean, var, eps):
    """Fold eval-mode BatchNorm2d into a 1x1 conv.

    w: (Cout, Cin). Returns (w_t (Cin, Cout), bias (Cout,)) so that
    y = x @ w_t + bias  ==  BN(Conv1x1(x)).
    (bias='auto' with a norm layer => conv itself has no bias.)
    """
    scale = gamma / jnp.sqrt(var + eps)
    w_fused = w * scale[:, None]          # (Cout, Cin)
    b_fused = beta - mean * scale         # (Cout,)
    return w_fused.T, b_fused             # pre-transposed: no in-kernel .T


def _pick_tile(n: int, max_tile: int = 1024) -> int:
    """Largest divisor of n that is a multiple of 8 and <= max_tile."""
    if n <= max_tile:
        return n
    for t in range(max_tile, 7, -1):
        if n % t == 0 and t % 8 == 0:
            return t
    return n  # no clean divisor: fall back to a single (full) tile


# ---------------------------------------------------------------------------
# Pallas kernel: one grid step = one batch element x one spatial tile of H*W
# ---------------------------------------------------------------------------
def _injection_kernel(xl_ref, xg_ref, p_ref,
                      wl_ref, bl_ref, wa_ref, ba_ref, wg_ref, bg_ref,
                      o_ref):
    # xl_ref: (1, tile_hw, Cin)   xg_ref: (1, Hg*Wg, Cin)
    # p_ref : (tile_hw, Hg*Wg)    w*_ref: (Cin, Cout)   b*_ref: (1, Cout)
    xl = xl_ref[0]                                # (tile_hw, Cin)
    xg = xg_ref[0]                                # (Hg*Wg,  Cin)

    # local_embedding (Conv1x1 + BN, fused)
    local = jnp.dot(xl, wl_ref[...], preferred_element_type=jnp.float32) + bl_ref[...]

    # global_act (Conv1x1 + BN + hard-sigmoid), then global_embedding
    ga = jnp.dot(xg, wa_ref[...], preferred_element_type=jnp.float32) + ba_ref[...]
    ga = jnp.clip(ga + 3.0, 0.0, 6.0) * (1.0 / 6.0)        # hsigmoid = ReLU6(x+3)/6
    ge = jnp.dot(xg, wg_ref[...], preferred_element_type=jnp.float32) + bg_ref[...]

    # Bilinear resize as one GEMM each: rows of the Kronecker matrix P select
    # this spatial tile's output pixels.
    sig = jnp.dot(p_ref[...], ga, preferred_element_type=jnp.float32)   # (tile_hw, Cout)
    gfe = jnp.dot(p_ref[...], ge, preferred_element_type=jnp.float32)   # (tile_hw, Cout)

    o_ref[0] = (local * sig + gfe).astype(o_ref.dtype)


# ---------------------------------------------------------------------------
# Module wrapper
# ---------------------------------------------------------------------------
class InjectionDotSumPallas:
    """InjectionDotSum with Conv1x1+BN folded (eval mode)."""

    def __init__(self, params, eps: float = 1e-5):
        # params: dict of conv weights (Cout, Cin) + BN stats per branch.
        self.wl_t, self.bl = _fuse_conv_bn(params["local_w"], params["local_gamma"],
                                           params["local_beta"], params["local_mean"],
                                           params["local_var"], eps)
        self.wa_t, self.ba = _fuse_conv_bn(params["act_w"], params["act_gamma"],
                                           params["act_beta"], params["act_mean"],
                                           params["act_var"], eps)
        self.wg_t, self.bg = _fuse_conv_bn(params["glob_w"], params["glob_gamma"],
                                           params["glob_beta"], params["glob_mean"],
                                           params["glob_var"], eps)
        self.outc = self.wl_t.shape[1]

    def __call__(self, x):
        x_l, x_g = x
        b, cin, h, w = x_l.shape
        _, _, hg, wg = x_g.shape
        outc = self.outc
        hw, hgwg = h * w, hg * wg

        # NCHW -> channels-last pixel rows (contiguous reshape/transpose glue).
        xl_rows = jnp.transpose(x_l, (0, 2, 3, 1)).reshape(b, hw, cin)
        xg_rows = jnp.transpose(x_g, (0, 2, 3, 1)).reshape(b, hgwg, cin)

        # Precomputed bilinear-resize matrix (align_corners=False), Kronecker form.
        p_mat = jnp.kron(_bilinear_matrix(hg, h), _bilinear_matrix(wg, w))  # (hw, hgwg)

        tile_hw = _pick_tile(hw)
        n_t = hw // tile_hw
        grid = (b, n_t)

        bl = self.bl.reshape(1, outc)
        ba = self.ba.reshape(1, outc)
        bg = self.bg.reshape(1, outc)

        flops = 2 * b * (hw * cin * outc                   # local embedding
                         + n_t * 2 * hgwg * cin * outc     # global act + embedding
                         + 2 * hw * hgwg * outc)           # two resize GEMMs
        bytes_accessed = 4 * (b * hw * cin + b * hgwg * cin + hw * hgwg
                              + 3 * cin * outc + 3 * outc + b * hw * outc)

        out_rows = pl.pallas_call(
            _injection_kernel,
            out_shape=jax.ShapeDtypeStruct((b, hw, outc), x_l.dtype),
            grid_spec=pltpu.PrefetchScalarGridSpec(
                num_scalar_prefetch=0,
                grid=grid,
                in_specs=[
                    pl.BlockSpec((1, tile_hw, cin), lambda bi, ti: (bi, ti, 0)),
                    pl.BlockSpec((1, hgwg, cin),    lambda bi, ti: (bi, 0, 0)),
                    pl.BlockSpec((tile_hw, hgwg),   lambda bi, ti: (ti, 0)),
                    pl.BlockSpec((cin, outc),       lambda bi, ti: (0, 0)),
                    pl.BlockSpec((1, outc),         lambda bi, ti: (0, 0)),
                    pl.BlockSpec((cin, outc),       lambda bi, ti: (0, 0)),
                    pl.BlockSpec((1, outc),         lambda bi, ti: (0, 0)),
                    pl.BlockSpec((cin, outc),       lambda bi, ti: (0, 0)),
                    pl.BlockSpec((1, outc),         lambda bi, ti: (0, 0)),
                ],
                out_specs=pl.BlockSpec((1, tile_hw, outc), lambda bi, ti: (bi, ti, 0)),
            ),
            compiler_params=pltpu.CompilerParams(
                dimension_semantics=("parallel", "parallel")),
            cost_estimate=pl.CostEstimate(
                flops=flops, transcendentals=0, bytes_accessed=bytes_accessed),
        )(xl_rows, xg_rows, p_mat,
          self.wl_t, bl, self.wa_t, ba, self.wg_t, bg)

        # rows -> NCHW
        return jnp.transpose(out_rows.reshape(b, h, w, outc), (0, 3, 1, 2))


# ---------------------------------------------------------------------------
# Independent plain-JAX reference (unfused BN, gather-based bilinear resize)
# ---------------------------------------------------------------------------
def _conv_bn_ref(x, w, gamma, beta, mean, var, eps=1e-5):
    y = jnp.einsum("bchw,oc->bohw", x, w)
    inv = 1.0 / jnp.sqrt(var + eps)
    return (y - mean[None, :, None, None]) * (gamma * inv)[None, :, None, None] \
        + beta[None, :, None, None]


def _hsigmoid_ref(x):
    return jnp.clip(x + 3.0, 0.0, 6.0) / 6.0


def _bilinear_resize_ref(x, out_h, out_w):
    """F.interpolate(mode='bilinear', align_corners=False) on NCHW."""
    _, _, h, w = x.shape
    sy = jnp.maximum((jnp.arange(out_h) + 0.5) * (h / out_h) - 0.5, 0.0)
    sx = jnp.maximum((jnp.arange(out_w) + 0.5) * (w / out_w) - 0.5, 0.0)
    y0 = jnp.floor(sy).astype(jnp.int32)
    y1 = jnp.minimum(y0 + 1, h - 1)
    x0 = jnp.floor(sx).astype(jnp.int32)
    x1 = jnp.minimum(x0 + 1, w - 1)
    wy1 = (sy - y0)[None, None, :, None]
    wx1 = (sx - x0)[None, None, None, :]
    top = x[:, :, y0, :]
    bot = x[:, :, y1, :]
    rows = top * (1.0 - wy1) + bot * wy1
    return rows[:, :, :, x0] * (1.0 - wx1) + rows[:, :, :, x1] * wx1


def _reference(x_l, x_g, params, eps=1e-5):
    _, _, h, w = x_l.shape
    local = _conv_bn_ref(x_l, params["local_w"], params["local_gamma"],
                         params["local_beta"], params["local_mean"],
                         params["local_var"], eps)
    gact = _hsigmoid_ref(_conv_bn_ref(x_g, params["act_w"], params["act_gamma"],
                                      params["act_beta"], params["act_mean"],
                                      params["act_var"], eps))
    gemb = _conv_bn_ref(x_g, params["glob_w"], params["glob_gamma"],
                        params["glob_beta"], params["glob_mean"],
                        params["glob_var"], eps)
    sig = _bilinear_resize_ref(gact, h, w)
    gfe = _bilinear_resize_ref(gemb, h, w)
    return local * sig + gfe


# ---------------------------------------------------------------------------
if __name__ == "__main__":
    key = jax.random.PRNGKey(0)
    keys = jax.random.split(key, 16)

    B, CIN, COUT = 2, 16, 32
    H, W = 16, 16          # local features
    HG, WG = 8, 8          # global (pooled) features

    x_l = jax.random.normal(keys[0], (B, CIN, H, W), dtype=jnp.float32)
    x_g = jax.random.normal(keys[1], (B, CIN, HG, WG), dtype=jnp.float32)

    def bn_params(k):
        k1, k2, k3, k4 = jax.random.split(k, 4)
        return (1.0 + 0.1 * jax.random.normal(k1, (COUT,)),          # gamma
                0.1 * jax.random.normal(k2, (COUT,)),                # beta
                0.1 * jax.random.normal(k3, (COUT,)),                # running mean
                0.5 + jax.random.uniform(k4, (COUT,)))               # running var

    params = {}
    for name, kw, kb in (("local", keys[2], keys[3]),
                         ("act", keys[4], keys[5]),
                         ("glob", keys[6], keys[7])):
        params[f"{name}_w"] = 0.1 * jax.random.normal(kw, (COUT, CIN), dtype=jnp.float32)
        g, bta, mn, vr = bn_params(kb)
        params[f"{name}_gamma"], params[f"{name}_beta"] = g, bta
        params[f"{name}_mean"], params[f"{name}_var"] = mn, vr

    module = InjectionDotSumPallas(params)
    out = jax.block_until_ready(module((x_l, x_g)))
    assert out.shape == (B, COUT, H, W), out.shape

    ref = jax.block_until_ready(_reference(x_l, x_g, params))
    assert jnp.allclose(out, ref, atol=1e-4, rtol=1e-4), float(jnp.abs(out - ref).max())

    print("KERNEL_OK")
</pallas_src>

<mosaic_0001>
module attributes {stable_mosaic.version = 11 : i64} {
  func.func @_injection_kernel(%arg0: i32, %arg1: i32, %arg2: memref<1x256x16xf32, #tpu.memory_space<vmem>>, %arg3: memref<1x64x16xf32, #tpu.memory_space<vmem>>, %arg4: memref<256x64xf32, #tpu.memory_space<vmem>>, %arg5: memref<16x32xf32, #tpu.memory_space<vmem>>, %arg6: memref<1x32xf32, #tpu.memory_space<vmem>>, %arg7: memref<16x32xf32, #tpu.memory_space<vmem>>, %arg8: memref<1x32xf32, #tpu.memory_space<vmem>>, %arg9: memref<16x32xf32, #tpu.memory_space<vmem>>, %arg10: memref<1x32xf32, #tpu.memory_space<vmem>>, %arg11: memref<1x256x32xf32, #tpu.memory_space<vmem>>) attributes {dimension_semantics = [#tpu.dimension_semantics<parallel>, #tpu.dimension_semantics<parallel>], iteration_bounds = array<i64: 2, 1>, scalar_prefetch = 0 : i64, scratch_operands = 0 : i64, tpu.core_type = #tpu.core_type<tc>, window_params = [{transform_indices = @transform_0, window_bounds = array<i64: 1, 256, 16>}, {transform_indices = @transform_1, window_bounds = array<i64: 1, 64, 16>}, {transform_indices = @transform_2, window_bounds = array<i64: 256, 64>}, {pipeline_mode = #tpu.pipeline_mode<synchronous>, transform_indices = @transform_3, window_bounds = array<i64: 16, 32>}, {pipeline_mode = #tpu.pipeline_mode<synchronous>, transform_indices = @transform_4, window_bounds = array<i64: 1, 32>}, {pipeline_mode = #tpu.pipeline_mode<synchronous>, transform_indices = @transform_5, window_bounds = array<i64: 16, 32>}, {pipeline_mode = #tpu.pipeline_mode<synchronous>, transform_indices = @transform_6, window_bounds = array<i64: 1, 32>}, {pipeline_mode = #tpu.pipeline_mode<synchronous>, transform_indices = @transform_7, window_bounds = array<i64: 16, 32>}, {pipeline_mode = #tpu.pipeline_mode<synchronous>, transform_indices = @transform_8, window_bounds = array<i64: 1, 32>}, {transform_indices = @transform_9, window_bounds = array<i64: 1, 256, 32>}]} {
    %c0 = arith.constant 0 : index
    %c0_0 = arith.constant 0 : index
    %c0_1 = arith.constant 0 : index
    %0 = vector.load %arg2[%c0, %c0_0, %c0_1] : memref<1x256x16xf32, #tpu.memory_space<vmem>>, vector<1x256x16xf32>
    %1 = vector.shape_cast %0 : vector<1x256x16xf32> to vector<256x16xf32>
    %c0_2 = arith.constant 0 : index
    %c0_3 = arith.constant 0 : index
    %c0_4 = arith.constant 0 : index
    %2 = vector.load %arg3[%c0_2, %c0_3, %c0_4] : memref<1x64x16xf32, #tpu.memory_space<vmem>>, vector<1x64x16xf32>
    %3 = vector.shape_cast %2 : vector<1x64x16xf32> to vector<64x16xf32>
    %c0_5 = arith.constant 0 : index
    %c0_6 = arith.constant 0 : index
    %4 = vector.load %arg5[%c0_5, %c0_6] : memref<16x32xf32, #tpu.memory_space<vmem>>, vector<16x32xf32>
    %cst = arith.constant dense<0.000000e+00> : vector<256x32xf32>
    %5 = tpu.matmul %1, %4, %cst {dimension_numbers = #tpu.dot_dimension_numbers<[1], [0], [0], [1], [0, 0, 1, 1], [], []>} : vector<256x16xf32>, vector<16x32xf32>, vector<256x32xf32> -> vector<256x32xf32>
    %c0_7 = arith.constant 0 : index
    %c0_8 = arith.constant 0 : index
    %6 = vector.load %arg6[%c0_7, %c0_8] : memref<1x32xf32, #tpu.memory_space<vmem>>, vector<1x32xf32>
    %7 = vector.broadcast %6 : vector<1x32xf32> to vector<256x32xf32>
    %8 = arith.addf %5, %7 : vector<256x32xf32>
    %c0_9 = arith.constant 0 : index
    %c0_10 = arith.constant 0 : index
    %9 = vector.load %arg7[%c0_9, %c0_10] : memref<16x32xf32, #tpu.memory_space<vmem>>, vector<16x32xf32>
    %cst_11 = arith.constant dense<0.000000e+00> : vector<64x32xf32>
    %10 = tpu.matmul %3, %9, %cst_11 {dimension_numbers = #tpu.dot_dimension_numbers<[1], [0], [0], [1], [0, 0, 1, 1], [], []>} : vector<64x16xf32>, vector<16x32xf32>, vector<64x32xf32> -> vector<64x32xf32>
    %c0_12 = arith.constant 0 : index
    %c0_13 = arith.constant 0 : index
    %11 = vector.load %arg8[%c0_12, %c0_13] : memref<1x32xf32, #tpu.memory_space<vmem>>, vector<1x32xf32>
    %12 = vector.broadcast %11 : vector<1x32xf32> to vector<64x32xf32>
    %13 = arith.addf %10, %12 : vector<64x32xf32>
    %cst_14 = arith.constant 3.000000e+00 : f32
    %14 = vector.broadcast %cst_14 : f32 to vector<64x32xf32>
    %15 = arith.addf %13, %14 : vector<64x32xf32>
    %cst_15 = arith.constant 0.000000e+00 : f32
    %cst_16 = arith.constant 6.000000e+00 : f32
    %16 = vector.broadcast %cst_15 : f32 to vector<64x32xf32>
    %17 = arith.maximumf %16, %15 : vector<64x32xf32>
    %18 = vector.broadcast %cst_16 : f32 to vector<64x32xf32>
    %19 = arith.minimumf %18, %17 : vector<64x32xf32>
    %cst_17 = arith.constant 0.166666672 : f32
    %20 = vector.broadcast %cst_17 : f32 to vector<64x32xf32>
    %21 = arith.mulf %19, %20 : vector<64x32xf32>
    %c0_18 = arith.constant 0 : index
    %c0_19 = arith.constant 0 : index
    %22 = vector.load %arg9[%c0_18, %c0_19] : memref<16x32xf32, #tpu.memory_space<vmem>>, vector<16x32xf32>
    %cst_20 = arith.constant dense<0.000000e+00> : vector<64x32xf32>
    %23 = tpu.matmul %3, %22, %cst_20 {dimension_numbers = #tpu.dot_dimension_numbers<[1], [0], [0], [1], [0, 0, 1, 1], [], []>} : vector<64x16xf32>, vector<16x32xf32>, vector<64x32xf32> -> vector<64x32xf32>
    %c0_21 = arith.constant 0 : index
    %c0_22 = arith.constant 0 : index
    %24 = vector.load %arg10[%c0_21, %c0_22] : memref<1x32xf32, #tpu.memory_space<vmem>>, vector<1x32xf32>
    %25 = vector.broadcast %24 : vector<1x32xf32> to vector<64x32xf32>
    %26 = arith.addf %23, %25 : vector<64x32xf32>
    %c0_23 = arith.constant 0 : index
    %c0_24 = arith.constant 0 : index
    %27 = vector.load %arg4[%c0_23, %c0_24] : memref<256x64xf32, #tpu.memory_space<vmem>>, vector<256x64xf32>
    %cst_25 = arith.constant dense<0.000000e+00> : vector<256x32xf32>
    %28 = tpu.matmul %27, %21, %cst_25 {dimension_numbers = #tpu.dot_dimension_numbers<[1], [0], [0], [1], [0, 0, 1, 1], [], []>} : vector<256x64xf32>, vector<64x32xf32>, vector<256x32xf32> -> vector<256x32xf32>
    %c0_26 = arith.constant 0 : index
    %c0_27 = arith.constant 0 : index
    %29 = vector.load %arg4[%c0_26, %c0_27] : memref<256x64xf32, #tpu.memory_space<vmem>>, vector<256x64xf32>
    %cst_28 = arith.constant dense<0.000000e+00> : vector<256x32xf32>
    %30 = tpu.matmul %29, %26, %cst_28 {dimension_numbers = #tpu.dot_dimension_numbers<[1], [0], [0], [1], [0, 0, 1, 1], [], []>} : vector<256x64xf32>, vector<64x32xf32>, vector<256x32xf32> -> vector<256x32xf32>
    %31 = arith.mulf %8, %28 : vector<256x32xf32>
    %32 = arith.addf %31, %30 : vector<256x32xf32>
    %c0_29 = arith.constant 0 : index
    %c0_30 = arith.constant 0 : index
    %c0_31 = arith.constant 0 : index
    %33 = vector.load %arg11[%c0_29, %c0_30, %c0_31] : memref<1x256x32xf32, #tpu.memory_space<vmem>>, vector<1x256x32xf32>
    %34 = vector.shape_cast %33 : vector<1x256x32xf32> to vector<256x32xf32>
    %35 = vector.shape_cast %32 : vector<256x32xf32> to vector<1x256x32xf32>
    tpu.vector_store %arg11[%c0_29, %c0_30, %c0_31], %35 {strides = array<i32>} : memref<1x256x32xf32, #tpu.memory_space<vmem>>, vector<1x256x32xf32>,
    return
  }
  func.func @transform_0(%arg0: i32, %arg1: i32) -> (i32, i32, i32) {
    %c0_i32 = arith.constant 0 : i32
    %c0_i32_0 = arith.constant 0 : i32
    return %arg0, %arg1, %c0_i32 : i32, i32, i32
  }
  func.func @transform_1(%arg0: i32, %arg1: i32) -> (i32, i32, i32) {
    %c0_i32 = arith.constant 0 : i32
    %c0_i32_0 = arith.constant 0 : i32
    %c0_i32_1 = arith.constant 0 : i32
    return %arg0, %c0_i32, %c0_i32_0 : i32, i32, i32
  }
  func.func @transform_2(%arg0: i32, %arg1: i32) -> (i32, i32) {
    %c0_i32 = arith.constant 0 : i32
    %c0_i32_0 = arith.constant 0 : i32
    return %arg1, %c0_i32 : i32, i32
  }
  func.func @transform_3(%arg0: i32, %arg1: i32) -> (i32, i32) {
    %c0_i32 = arith.constant 0 : i32
    %c0_i32_0 = arith.constant 0 : i32
    %c0_i32_1 = arith.constant 0 : i32
    return %c0_i32, %c0_i32_0 : i32, i32
  }
  func.func @transform_4(%arg0: i32, %arg1: i32) -> (i32, i32) {
    %c0_i32 = arith.constant 0 : i32
    %c0_i32_0 = arith.constant 0 : i32
    %c0_i32_1 = arith.constant 0 : i32
    return %c0_i32, %c0_i32_0 : i32, i32
  }
  func.func @transform_5(%arg0: i32, %arg1: i32) -> (i32, i32) {
    %c0_i32 = arith.constant 0 : i32
    %c0_i32_0 = arith.constant 0 : i32
    %c0_i32_1 = arith.constant 0 : i32
    return %c0_i32, %c0_i32_0 : i32, i32
  }
  func.func @transform_6(%arg0: i32, %arg1: i32) -> (i32, i32) {
    %c0_i32 = arith.constant 0 : i32
    %c0_i32_0 = arith.constant 0 : i32
    %c0_i32_1 = arith.constant 0 : i32
    return %c0_i32, %c0_i32_0 : i32, i32
  }
  func.func @transform_7(%arg0: i32, %arg1: i32) -> (i32, i32) {
    %c0_i32 = arith.constant 0 : i32
    %c0_i32_0 = arith.constant 0 : i32
    %c0_i32_1 = arith.constant 0 : i32
    return %c0_i32, %c0_i32_0 : i32, i32
  }
  func.func @transform_8(%arg0: i32, %arg1: i32) -> (i32, i32) {
    %c0_i32 = arith.constant 0 : i32
    %c0_i32_0 = arith.constant 0 : i32
    %c0_i32_1 = arith.constant 0 : i32
    return %c0_i32, %c0_i32_0 : i32, i32
  }
  func.func @transform_9(%arg0: i32, %arg1: i32) -> (i32, i32, i32) {
    %c0_i32 = arith.constant 0 : i32
    %c0_i32_0 = arith.constant 0 : i32
    return %arg0, %arg1, %c0_i32 : i32, i32, i32
  }
}

</mosaic_0001>

<llo_original>
// kernel: tpu_custom_call.1
$region0: #{tpu_custom_call.1}
  #allocation0 [shape = 'u32[]', space=smem, size = 0x4, offset = 0x4, fixed_abs, tag = 'smem constant byte address 0x4 - core index']
  #allocation1 [shape = 'u32[144,128]{1,0:T(1,128)}', space=vmem, size = 0x12000, scoped, tag = 'internal scratch']
  %s0 = inlined_call_operand.vmem [shape: f32[2,256,16], index: 0, kind: input, shape index: {}]
  %s1 = inlined_call_operand.vmem [shape: f32[2,64,16], index: 1, kind: input, shape index: {}]
  %s2 = inlined_call_operand.vmem [shape: f32[256,64], index: 2, kind: input, shape index: {}]
  %s3 = inlined_call_operand.vmem [shape: f32[16,32], index: 3, kind: input, shape index: {}]
  %s4 = inlined_call_operand.vmem [shape: f32[1,32], index: 4, kind: input, shape index: {}]
  %s5 = inlined_call_operand.vmem [shape: f32[16,32], index: 5, kind: input, shape index: {}]
  %s6 = inlined_call_operand.vmem [shape: f32[1,32], index: 6, kind: input, shape index: {}]
  %s7 = inlined_call_operand.vmem [shape: f32[16,32], index: 7, kind: input, shape index: {}]
  %s8 = inlined_call_operand.vmem [shape: f32[1,32], index: 8, kind: input, shape index: {}]
  %s9 = inlined_call_operand.vmem [shape: f32[2,256,32], index: 9, kind: output, shape index: {}]
  %s10 = sld [smem:[#allocation0]]
  $region69: #{tpu_custom_call.1} parent=0
    _
  %s12 = ssub.s32 1, %s10
  %s13 = scalar_select 0, %s12, %s10
  loop: start=0, step=1, limit=4
  $region2: #{tpu_custom_call.1} parent=0 // loop_pre_header
    _
  $region3: #{tpu_custom_call.1} parent=0 // loop_header
    %s15 = sphi 0, %s19
    %p16 = scmp.ge.s32.totalorder %s15, 4
    %s22 = sphi 0, %s34
    %s23 = sphi 0, %s30
    %s24 = sphi 0, %s22
    %s25 = sphi 0, %s23
    %s26 = sphi 0, %s24
    %s27 = sphi 0, %s25
    %s39 = sphi 0, %s41
    %s42 = sphi 0, %s39
    %s43 = sphi 0, %s42
    %s59 = sphi 0, %s43
    %s65 = sphi 0, %s67
    %s68 = sphi 0, %s65
    %s69 = sphi 0, %s68
    %s85 = sphi 0, %s69
    %s91 = sphi 0, %s93
    %s94 = sphi 0, %s91
    %s95 = sphi 0, %s94
    %s111 = sphi 0, %s95
    %s115 = sphi 0, %s115
    %s117 = sphi 0, %s115
    %s118 = sphi 0, %s117
    %s132 = sphi 0, %s118
    %s136 = sphi 0, %s136
    %s138 = sphi 0, %s136
    %s139 = sphi 0, %s138
    %s153 = sphi 0, %s139
    %s157 = sphi 0, %s157
    %s159 = sphi 0, %s157
    %s160 = sphi 0, %s159
    %s174 = sphi 0, %s160
    %s178 = sphi 0, %s178
    %s180 = sphi 0, %s178
    %s181 = sphi 0, %s180
    %s195 = sphi 0, %s181
    %s199 = sphi 0, %s199
    %s201 = sphi 0, %s199
    %s202 = sphi 0, %s201
    %s216 = sphi 0, %s202
    %s220 = sphi 0, %s220
    %s222 = sphi 0, %s220
    %s223 = sphi 0, %s222
    %s237 = sphi 0, %s223
    %s245 = sphi 0, %s247
    %s248 = sphi 0, %s245
    %s249 = sphi 0, %s248
    %s265 = sphi 0, %s249
  $region4: #{tpu_custom_call.1} parent=0 // loop_header_branch
    %18 = sbr.rel (%p16) target = $region8
  $region5: #{tpu_custom_call.1} parent=0 // loop_body
    %s20 = ssub.s32 %s15, 1
    %s21 = ssub.s32 %s15, 2
    %s28 = sadd.s32 1, %s23
    %p29 = scmp.ge.s32.totalorder %s28, 1
    %s30 = scalar_select %p29, 0, %s28
    %s31 = sadd.s32 1, %s22
    %s32 = scalar_select %p29, %s31, %s22
    %p33 = scmp.ge.s32.totalorder %s32, 2
    %s34 = scalar_select %p33, 0, %s32
    %s35 = ssub.s32 %s22, %s34
    %s36 = ssub.s32 %s23, %s30
    %s37 = sor.u32 %s35, %s36
    %p38 = scmp.eq.s32.totalorder %s37, 0
    %s40 = sadd.s32 %s39, 1
    %s41 = scalar_select %p38, %s39, %s40
    %p44 = pneg %p38
    %p45 = scmp.eq.s32.totalorder %s15, 1
    %p46 = por %p44, %p45
    %p47 = scmp.ne.s32.totalorder %s39, %s42
    %p48 = scmp.eq.s32.totalorder %s15, 0
    %p49 = por %p47, %p48
    %p50 = scmp.ne.s32.totalorder %s39, %s42
    %p51 = scmp.eq.s32.totalorder %s20, 1
    %p52 = por %p50, %p51
    %p53 = scmp.ne.s32.totalorder %s42, %s43
    %p54 = scmp.eq.s32.totalorder %s20, 0
    %p55 = por %p53, %p54
    %p56 = scmp.ne.s32.totalorder %s42, %s43
    %p57 = scmp.eq.s32.totalorder %s21, 1
    %p58 = por %p56, %p57
    %p60 = scmp.ne.s32.totalorder %s43, %s59
    %p61 = scmp.eq.s32.totalorder %s21, 0
    %p62 = por %p60, %p61
    %s63 = ssub.s32 %s22, %s34
    %p64 = scmp.eq.s32.totalorder %s63, 0
    %s66 = sadd.s32 %s65, 1
    %s67 = scalar_select %p64, %s65, %s66
    %p70 = pneg %p64
    %p71 = scmp.eq.s32.totalorder %s15, 1
    %p72 = por %p70, %p71
    %p73 = scmp.ne.s32.totalorder %s65, %s68
    %p74 = scmp.eq.s32.totalorder %s15, 0
    %p75 = por %p73, %p74
    %p76 = scmp.ne.s32.totalorder %s65, %s68
    %p77 = scmp.eq.s32.totalorder %s20, 1
    %p78 = por %p76, %p77
    %p79 = scmp.ne.s32.totalorder %s68, %s69
    %p80 = scmp.eq.s32.totalorder %s20, 0
    %p81 = por %p79, %p80
    %p82 = scmp.ne.s32.totalorder %s68, %s69
    %p83 = scmp.eq.s32.totalorder %s21, 1
    %p84 = por %p82, %p83
    %p86 = scmp.ne.s32.totalorder %s69, %s85
    %p87 = scmp.eq.s32.totalorder %s21, 0
    %p88 = por %p86, %p87
    %s89 = ssub.s32 %s23, %s30
    %p90 = scmp.eq.s32.totalorder %s89, 0
    %s92 = sadd.s32 %s91, 1
    %s93 = scalar_select %p90, %s91, %s92
    %p96 = pneg %p90
    %p97 = scmp.eq.s32.totalorder %s15, 1
    %p98 = por %p96, %p97
    %p99 = scmp.ne.s32.totalorder %s91, %s94
    %p100 = scmp.eq.s32.totalorder %s15, 0
    %p101 = por %p99, %p100
    %p102 = scmp.ne.s32.totalorder %s91, %s94
    %p103 = scmp.eq.s32.totalorder %s20, 1
    %p104 = por %p102, %p103
    %p105 = scmp.ne.s32.totalorder %s94, %s95
    %p106 = scmp.eq.s32.totalorder %s20, 0
    %p107 = por %p105, %p106
    %p108 = scmp.ne.s32.totalorder %s94, %s95
    %p109 = scmp.eq.s32.totalorder %s21, 1
    %p110 = por %p108, %p109
    %p112 = scmp.ne.s32.totalorder %s95, %s111
    %p113 = scmp.eq.s32.totalorder %s21, 0
    %p114 = por %p112, %p113
    %s116 = sadd.s32 %s115, 1
    %p119 = scmp.eq.s32.totalorder %s15, 1
    %p120 = scmp.ne.s32.totalorder %s115, %s117
    %p121 = scmp.eq.s32.totalorder %s15, 0
    %p122 = por %p120, %p121
    %p123 = scmp.ne.s32.totalorder %s115, %s117
    %p124 = scmp.eq.s32.totalorder %s20, 1
    %p125 = por %p123, %p124
    %p126 = scmp.ne.s32.totalorder %s117, %s118
    %p127 = scmp.eq.s32.totalorder %s20, 0
    %p128 = por %p126, %p127
    %p129 = scmp.ne.s32.totalorder %s117, %s118
    %p130 = scmp.eq.s32.totalorder %s21, 1
    %p131 = por %p129, %p130
    %p133 = scmp.ne.s32.totalorder %s118, %s132
    %p134 = scmp.eq.s32.totalorder %s21, 0
    %p135 = por %p133, %p134
    %s137 = sadd.s32 %s136, 1
    %p140 = scmp.eq.s32.totalorder %s15, 1
    %p141 = scmp.ne.s32.totalorder %s136, %s138
    %p142 = scmp.eq.s32.totalorder %s15, 0
    %p143 = por %p141, %p142
    %p144 = scmp.ne.s32.totalorder %s136, %s138
    %p145 = scmp.eq.s32.totalorder %s20, 1
    %p146 = por %p144, %p145
    %p147 = scmp.ne.s32.totalorder %s138, %s139
    %p148 = scmp.eq.s32.totalorder %s20, 0
    %p149 = por %p147, %p148
    %p150 = scmp.ne.s32.totalorder %s138, %s139
    %p151 = scmp.eq.s32.totalorder %s21, 1
    %p152 = por %p150, %p151
    %p154 = scmp.ne.s32.totalorder %s139, %s153
    %p155 = scmp.eq.s32.totalorder %s21, 0
    %p156 = por %p154, %p155
    %s158 = sadd.s32 %s157, 1
    %p161 = scmp.eq.s32.totalorder %s15, 1
    %p162 = scmp.ne.s32.totalorder %s157, %s159
    %p163 = scmp.eq.s32.totalorder %s15, 0
    %p164 = por %p162, %p163
    %p165 = scmp.ne.s32.totalorder %s157, %s159
    %p166 = scmp.eq.s32.totalorder %s20, 1
    %p167 = por %p165, %p166
    %p168 = scmp.ne.s32.totalorder %s159, %s160
    %p169 = scmp.eq.s32.totalorder %s20, 0
    %p170 = por %p168, %p169
    %p171 = scmp.ne.s32.totalorder %s159, %s160
    %p172 = scmp.eq.s32.totalorder %s21, 1
    %p173 = por %p171, %p172
    %p175 = scmp.ne.s32.totalorder %s160, %s174
    %p176 = scmp.eq.s32.totalorder %s21, 0
    %p177 = por %p175, %p176
    %s179 = sadd.s32 %s178, 1
    %p182 = scmp.eq.s32.totalorder %s15, 1
    %p183 = scmp.ne.s32.totalorder %s178, %s180
    %p184 = scmp.eq.s32.totalorder %s15, 0
    %p185 = por %p183, %p184
    %p186 = scmp.ne.s32.totalorder %s178, %s180
    %p187 = scmp.eq.s32.totalorder %s20, 1
    %p188 = por %p186, %p187
    %p189 = scmp.ne.s32.totalorder %s180, %s181
    %p190 = scmp.eq.s32.totalorder %s20, 0
    %p191 = por %p189, %p190
    %p192 = scmp.ne.s32.totalorder %s180, %s181
    %p193 = scmp.eq.s32.totalorder %s21, 1
    %p194 = por %p192, %p193
    %p196 = scmp.ne.s32.totalorder %s181, %s195
    %p197 = scmp.eq.s32.totalorder %s21, 0
    %p198 = por %p196, %p197
    %s200 = sadd.s32 %s199, 1
    %p203 = scmp.eq.s32.totalorder %s15, 1
    %p204 = scmp.ne.s32.totalorder %s199, %s201
    %p205 = scmp.eq.s32.totalorder %s15, 0
    %p206 = por %p204, %p205
    %p207 = scmp.ne.s32.totalorder %s199, %s201
    %p208 = scmp.eq.s32.totalorder %s20, 1
    %p209 = por %p207, %p208
    %p210 = scmp.ne.s32.totalorder %s201, %s202
    %p211 = scmp.eq.s32.totalorder %s20, 0
    %p212 = por %p210, %p211
    %p213 = scmp.ne.s32.totalorder %s201, %s202
    %p214 = scmp.eq.s32.totalorder %s21, 1
    %p215 = por %p213, %p214
    %p217 = scmp.ne.s32.totalorder %s202, %s216
    %p218 = scmp.eq.s32.totalorder %s21, 0
    %p219 = por %p217, %p218
    %s221 = sadd.s32 %s220, 1
    %p224 = scmp.eq.s32.totalorder %s15, 1
    %p225 = scmp.ne.s32.totalorder %s220, %s222
    %p226 = scmp.eq.s32.totalorder %s15, 0
    %p227 = por %p225, %p226
    %p228 = scmp.ne.s32.totalorder %s220, %s222
    %p229 = scmp.eq.s32.totalorder %s20, 1
    %p230 = por %p228, %p229
    %p231 = scmp.ne.s32.totalorder %s222, %s223
    %p232 = scmp.eq.s32.totalorder %s20, 0
    %p233 = por %p231, %p232
    %p234 = scmp.ne.s32.totalorder %s222, %s223
    %p235 = scmp.eq.s32.totalorder %s21, 1
    %p236 = por %p234, %p235
    %p238 = scmp.ne.s32.totalorder %s223, %s237
    %p239 = scmp.eq.s32.totalorder %s21, 0
    %p240 = por %p238, %p239
    %s241 = ssub.s32 %s22, %s34
    %s242 = ssub.s32 %s23, %s30
    %s243 = sor.u32 %s241, %s242
    %p244 = scmp.eq.s32.totalorder %s243, 0
    %s246 = sadd.s32 %s245, 1
    %s247 = scalar_select %p244, %s245, %s246
    %p250 = pneg %p244
    %p251 = scmp.eq.s32.totalorder %s15, 1
    %p252 = por %p250, %p251
    %p253 = scmp.ne.s32.totalorder %s245, %s248
    %p254 = scmp.eq.s32.totalorder %s15, 0
    %p255 = por %p253, %p254
    %p256 = scmp.ne.s32.totalorder %s245, %s248
    %p257 = scmp.eq.s32.totalorder %s20, 1
    %p258 = por %p256, %p257
    %p259 = scmp.ne.s32.totalorder %s248, %s249
    %p260 = scmp.eq.s32.totalorder %s20, 0
    %p261 = por %p259, %p260
    %p262 = scmp.ne.s32.totalorder %s248, %s249
    %p263 = scmp.eq.s32.totalorder %s21, 1
    %p264 = por %p262, %p263
    %p266 = scmp.ne.s32.totalorder %s249, %s265
    %p267 = scmp.eq.s32.totalorder %s21, 0
    %p268 = por %p266, %p267
    %p269 = scmp.le.s32.totalorder 1, %s15
    %p270 = scmp.lt.s32.totalorder %s15, 3
    %p271 = pnand %p269, %p270
    %p272 = pneg %p271
    // Predicated region
    $region9: #{tpu_custom_call.1} parent=5 // pred_check
      _
    $region10: #{tpu_custom_call.1} parent=5 // pred_check_branch
      %274 = sbr.rel (%p271) target = $region12
    $region11: #{tpu_custom_call.1} parent=5 // pred_region
      %s275 = ssub.s32 %s15, 1
      // Predicated region
      $region13: #{tpu_custom_call.1} parent=11 // pred_check
        %p276 = pneg %p107
      $region14: #{tpu_custom_call.1} parent=11 // pred_check_branch
        %278 = sbr.rel (%p276) target = $region16
      $region15: #{tpu_custom_call.1} parent=11 // pred_region
        %s279 = smul.u32 32, %s25
        %p280 = scmp.lt.s32.totalorder %s279, 31
        %s281 = scalar_select %p280, %s279, 31
        %s282 = smul.addr %s281, 8
        %s283 = scalar_lea.vmem %s2, %s282
        %s284 = smul.u32 32, %s25
      $region16: #{tpu_custom_call.1} parent=11 // pred_fallthru
        _
      // Predicated region
      $region17: #{tpu_custom_call.1} parent=11 // pred_check
        %p285 = pneg %p128
      $region18: #{tpu_custom_call.1} parent=11 // pred_check_branch
        %287 = sbr.rel (%p285) target = $region20
      $region19: #{tpu_custom_call.1} parent=11 // pred_region
        _
      $region20: #{tpu_custom_call.1} parent=11 // pred_fallthru
        _
      // Predicated region
      $region21: #{tpu_custom_call.1} parent=11 // pred_check
        %p288 = pneg %p149
      $region22: #{tpu_custom_call.1} parent=11 // pred_check_branch
        %290 = sbr.rel (%p288) target = $region24
      $region23: #{tpu_custom_call.1} parent=11 // pred_region
        _
      $region24: #{tpu_custom_call.1} parent=11 // pred_fallthru
        _
      // Predicated region
      $region25: #{tpu_custom_call.1} parent=11 // pred_check
        %p291 = pneg %p170
      $region26: #{tpu_custom_call.1} parent=11 // pred_check_branch
        %293 = sbr.rel (%p291) target = $region28
      $region27: #{tpu_custom_call.1} parent=11 // pred_region
        _
      $region28: #{tpu_custom_call.1} parent=11 // pred_fallthru
        _
      // Predicated region
      $region29: #{tpu_custom_call.1} parent=11 // pred_check
        %p294 = pneg %p191
      $region30: #{tpu_custom_call.1} parent=11 // pred_check_branch
        %296 = sbr.rel (%p294) target = $region32
      $region31: #{tpu_custom_call.1} parent=11 // pred_region
        _
      $region32: #{tpu_custom_call.1} parent=11 // pred_fallthru
        _
      // Predicated region
      $region33: #{tpu_custom_call.1} parent=11 // pred_check
        %p297 = pneg %p212
      $region34: #{tpu_custom_call.1} parent=11 // pred_check_branch
        %299 = sbr.rel (%p297) target = $region36
      $region35: #{tpu_custom_call.1} parent=11 // pred_region
        _
      $region36: #{tpu_custom_call.1} parent=11 // pred_fallthru
        _
      // Predicated region
      $region37: #{tpu_custom_call.1} parent=11 // pred_check
        %p300 = pneg %p233
      $region38: #{tpu_custom_call.1} parent=11 // pred_check_branch
        %302 = sbr.rel (%p300) target = $region40
      $region39: #{tpu_custom_call.1} parent=11 // pred_region
        _
      $region40: #{tpu_custom_call.1} parent=11 // pred_fallthru
        _
    $region12: #{tpu_custom_call.1} parent=5 // pred_fallthru
      _
    %p303 = scmp.lt.s32.totalorder %s15, 2
    // Predicated region
    $region41: #{tpu_custom_call.1} parent=5 // pred_check
      %p304 = pneg %p303
    $region42: #{tpu_custom_call.1} parent=5 // pred_check_branch
      %306 = sbr.rel (%p304) target = $region44
    $region43: #{tpu_custom_call.1} parent=5 // pred_region
      // Predicated region
      $region45: #{tpu_custom_call.1} parent=43 // pred_check
        %p307 = pneg %p49
      $region46: #{tpu_custom_call.1} parent=43 // pred_check_branch
        %309 = sbr.rel (%p307) target = $region48
      $region47: #{tpu_custom_call.1} parent=43 // pred_region
        %s310 = smul.u32 32, %s23
        %p311 = scmp.lt.s32.totalorder %s22, 1
        %s312 = scalar_select %p311, %s22, 1
        %p313 = scmp.lt.s32.totalorder %s310, 31
        %s314 = scalar_select %p313, %s310, 31
        %s315 = smul.addr %s312, 32
        %s316 = sadd.s32 %s314, %s315
        %s317 = smul.addr %s316, 8
        %s318 = scalar_lea.vmem %s0, %s317
        %s319 = smul.u32 32, %s23
      $region48: #{tpu_custom_call.1} parent=43 // pred_fallthru
        _
      // Predicated region
      $region49: #{tpu_custom_call.1} parent=43 // pred_check
        %p320 = pneg %p75
      $region50: #{tpu_custom_call.1} parent=43 // pred_check_branch
        %322 = sbr.rel (%p320) target = $region52
      $region51: #{tpu_custom_call.1} parent=43 // pred_region
        %p323 = scmp.lt.s32.totalorder %s22, 1
        %s324 = scalar_select %p323, %s22, 1
        %s325 = smul.addr %s324, 8
        %s326 = smul.addr %s325, 8
        %s327 = scalar_lea.vmem %s1, %s326
      $region52: #{tpu_custom_call.1} parent=43 // pred_fallthru
        _
    $region44: #{tpu_custom_call.1} parent=5 // pred_fallthru
      _
    %p328 = scmp.le.s32.totalorder 1, %s15
    %p329 = scmp.lt.s32.totalorder %s15, 3
    %p330 = pnand %p328, %p329
    %p331 = pneg %p330
    // Predicated region
    $region53: #{tpu_custom_call.1} parent=5 // pred_check
      _
    $region54: #{tpu_custom_call.1} parent=5 // pred_check_branch
      %333 = sbr.rel (%p330) target = $region56
    $region55: #{tpu_custom_call.1} parent=5 // pred_region
      %s334 = ssub.s32 %s15, 1
      %s335 = smul.u32 32, %s25
      %p336 = scmp.lt.s32.totalorder %s24, 1
      %s337 = scalar_select %p336, %s24, 1
      %p338 = scmp.lt.s32.totalorder %s335, 31
      %s339 = scalar_select %p338, %s335, 31
      %s340 = smul.addr %s337, 32
      %s341 = sadd.s32 %s339, %s340
      %s342 = smul.addr %s341, 8
      %s343 = scalar_lea.vmem %s0, %s342
      %p344 = pneg %p55
      %p345 = pneg %p52
      %p346 = scmp.lt.s32.totalorder %s24, 1
      %s347 = scalar_select %p346, %s24, 1
      %s348 = smul.addr %s347, 8
      %s349 = smul.addr %s348, 8
      %s350 = scalar_lea.vmem %s1, %s349
      %p351 = pneg %p81
      %p352 = pneg %p78
      %s353 = smul.u32 32, %s25
      %p354 = scmp.lt.s32.totalorder %s353, 31
      %s355 = scalar_select %p354, %s353, 31
      %s356 = smul.addr %s355, 8
      %s357 = scalar_lea.vmem %s2, %s356
      %p358 = pneg %p107
      %p359 = pneg %p104
      %p360 = pneg %p128
      %p361 = pneg %p125
      %p362 = pneg %p149
      %p363 = pneg %p146
      %p364 = pneg %p170
      %p365 = pneg %p167
      %p366 = pneg %p191
      %p367 = pneg %p188
      %p368 = pneg %p212
      %p369 = pneg %p209
      %p370 = pneg %p233
      %p371 = pneg %p230
      %p372 = pneg %p261
      %p373 = pneg %p258
      %s374 = smul.u32 32, %s25
      %p375 = scmp.lt.s32.totalorder %s24, 1
      %s376 = scalar_select %p375, %s24, 1
      %p377 = scmp.lt.s32.totalorder %s374, 31
      %s378 = scalar_select %p377, %s374, 31
      %s379 = smul.addr %s376, 32
      %s380 = sadd.s32 %s378, %s379
      %s381 = smul.addr %s380, 8
      %s382 = scalar_lea.vmem %s9, %s381
      %s383 = smul.u32 32, %s25
      %p384 = scmp.lt.s32.totalorder %s24, 1
      %s385 = scalar_select %p384, %s24, 1
      %p386 = scmp.lt.s32.totalorder %s383, 31
      %s387 = scalar_select %p386, %s383, 31
      %s388 = smul.addr %s385, 32
      %s389 = sadd.s32 %s387, %s388
      %s390 = smul.addr %s389, 8
      %s391 = scalar_lea.vmem %s0, %s390
      %s392 = smul.u32 32, %s25
      %p393 = scmp.lt.s32.totalorder %s24, 1
      %s394 = scalar_select %p393, %s24, 1
      %s395 = smul.addr %s394, 8
      %s396 = smul.addr %s395, 8
      %s397 = scalar_lea.vmem %s1, %s396
      %s398 = smul.u32 32, %s25
      %p399 = scmp.lt.s32.totalorder %s398, 31
      %s400 = scalar_select %p399, %s398, 31
      %s401 = smul.addr %s400, 8
      %s402 = scalar_lea.vmem %s2, %s401
      %s403 = smul.u32 32, %s25
      %s404 = smul.u32 32, %s25
      %p405 = scmp.lt.s32.totalorder %s24, 1
      %s406 = scalar_select %p405, %s24, 1
      %p407 = scmp.lt.s32.totalorder %s404, 31
      %s408 = scalar_select %p407, %s404, 31
      %s409 = smul.addr %s406, 32
      %s410 = sadd.s32 %s408, %s409
      %s411 = smul.addr %s410, 8
      %s412 = scalar_lea.vmem %s9, %s411
      %s413 = smul.u32 32, %s25
      %v414 = vld [vmem:[%s391] sm:$0xff]
      %v415 = vld [vmem:[%s391 + $0x8] sm:$0xff]
      %v416 = vld [vmem:[%s391 + $0x10] sm:$0xff]
      %v417 = vld [vmem:[%s391 + $0x18] sm:$0xff]
      %v418 = vld [vmem:[%s391 + $0x20] sm:$0xff]
      %v419 = vld [vmem:[%s391 + $0x28] sm:$0xff]
      %v420 = vld [vmem:[%s391 + $0x30] sm:$0xff]
      %v421 = vld [vmem:[%s391 + $0x38] sm:$0xff]
      %v422 = vld [vmem:[%s391 + $0x40] sm:$0xff]
      %v423 = vld [vmem:[%s391 + $0x48] sm:$0xff]
      %v424 = vld [vmem:[%s391 + $0x50] sm:$0xff]
      %v425 = vld [vmem:[%s391 + $0x58] sm:$0xff]
      %v426 = vld [vmem:[%s391 + $0x60] sm:$0xff]
      %v427 = vld [vmem:[%s391 + $0x68] sm:$0xff]
      %v428 = vld [vmem:[%s391 + $0x70] sm:$0xff]
      %v429 = vld [vmem:[%s391 + $0x78] sm:$0xff]
      %v430 = vld [vmem:[%s391 + $0x80] sm:$0xff]
      %v431 = vld [vmem:[%s391 + $0x88] sm:$0xff]
      %v432 = vld [vmem:[%s391 + $0x90] sm:$0xff]
      %v433 = vld [vmem:[%s391 + $0x98] sm:$0xff]
      %v434 = vld [vmem:[%s391 + $0xa0] sm:$0xff]
      %v435 = vld [vmem:[%s391 + $0xa8] sm:$0xff]
      %v436 = vld [vmem:[%s391 + $0xb0] sm:$0xff]
      %v437 = vld [vmem:[%s391 + $0xb8] sm:$0xff]
      %v438 = vld [vmem:[%s391 + $0xc0] sm:$0xff]
      %v439 = vld [vmem:[%s391 + $0xc8] sm:$0xff]
      %v440 = vld [vmem:[%s391 + $0xd0] sm:$0xff]
      %v441 = vld [vmem:[%s391 + $0xd8] sm:$0xff]
      %v442 = vld [vmem:[%s391 + $0xe0] sm:$0xff]
      %v443 = vld [vmem:[%s391 + $0xe8] sm:$0xff]
      %v444 = vld [vmem:[%s391 + $0xf0] sm:$0xff]
      %v445 = vld [vmem:[%s391 + $0xf8] sm:$0xff]
      %v446 = vld [vmem:[%s397] sm:$0xff]
      %v447 = vld [vmem:[%s397 + $0x8] sm:$0xff]
      %v448 = vld [vmem:[%s397 + $0x10] sm:$0xff]
      %v449 = vld [vmem:[%s397 + $0x18] sm:$0xff]
      %v450 = vld [vmem:[%s397 + $0x20] sm:$0xff]
      %v451 = vld [vmem:[%s397 + $0x28] sm:$0xff]
      %v452 = vld [vmem:[%s397 + $0x30] sm:$0xff]
      %v453 = vld [vmem:[%s397 + $0x38] sm:$0xff]
      %v454 = vld [vmem:[%s3] sm:$0xff]
      %v455 = vld [vmem:[%s3 + $0x8] sm:$0xff]
      %v456 = vld [vmem:[%s4] sm:$0x1]
      %v458 = vlaneseq
      %v459 = vshrl.u32 %v458, 7
      %v460 = vsub.s32 0, %v459
      %v461 = vrot.slane %v456, %v460
      %vm463 = vcmask 130048
      %v465 = vsel %vm463, %v414, 0
      %v468 = vsel %vm463, %v415, 0
      %v471 = vsel %vm463, %v416, 0
      %v474 = vsel %vm463, %v417, 0
      %v477 = vsel %vm463, %v418, 0
      %v480 = vsel %vm463, %v419, 0
      %v483 = vsel %vm463, %v420, 0
      %v486 = vsel %vm463, %v421, 0
      %v489 = vsel %vm463, %v422, 0
      %v492 = vsel %vm463, %v423, 0
      %v495 = vsel %vm463, %v424, 0
      %v498 = vsel %vm463, %v425, 0
      %v501 = vsel %vm463, %v426, 0
      %v504 = vsel %vm463, %v427, 0
      %v507 = vsel %vm463, %v428, 0
      %v510 = vsel %vm463, %v429, 0
      %v513 = vsel %vm463, %v430, 0
      %v516 = vsel %vm463, %v431, 0
      %v519 = vsel %vm463, %v432, 0
      %v522 = vsel %vm463, %v433, 0
      %v525 = vsel %vm463, %v434, 0
      %v528 = vsel %vm463, %v435, 0
      %v531 = vsel %vm463, %v436, 0
      %v534 = vsel %vm463, %v437, 0
      %v537 = vsel %vm463, %v438, 0
      %v540 = vsel %vm463, %v439, 0
      %v543 = vsel %vm463, %v440, 0
      %v546 = vsel %vm463, %v441, 0
      %v549 = vsel %vm463, %v442, 0
      %v552 = vsel %vm463, %v443, 0
      %v555 = vsel %vm463, %v444, 0
      %v558 = vsel %vm463, %v445, 0
      %560 = vmatprep.subr.mxu0 0.0
      %561 = vmatpush1.msra.mxu0 %v454
      %562 = vmatprep.subr.mxu0 0.0
      %563 = vmatpush1.msra.mxu0 %v455
      %564 = vmatprep.subr.mxu0 0.0
      %565 = vmatpush1.msra.mxu0 0.0
      %566 = vmatprep.subr.mxu0 0.0
      %567 = vmatpush1.msra.mxu0 0.0
      %568 = vmatprep.subr.mxu0 0.0
      %569 = vmatpush1.msra.mxu0 0.0
      %570 = vmatprep.subr.mxu0 0.0
      %571 = vmatpush1.msra.mxu0 0.0
      %572 = vmatprep.subr.mxu0 0.0
      %573 = vmatpush1.msra.mxu0 0.0
      %574 = vmatprep.subr.mxu0 0.0
      %575 = vmatpush1.msra.mxu0 0.0
      %576 = vmatprep.subr.mxu0 0.0
      %577 = vmatpush1.msra.mxu0 0.0
      %578 = vmatprep.subr.mxu0 0.0
      %579 = vmatpush1.msra.mxu0 0.0
      %580 = vmatprep.subr.mxu0 0.0
      %581 = vmatpush1.msra.mxu0 0.0
      %582 = vmatprep.subr.mxu0 0.0
      %583 = vmatpush1.msra.mxu0 0.0
      %584 = vmatprep.subr.mxu0 0.0
      %585 = vmatpush1.msra.mxu0 0.0
      %586 = vmatprep.subr.mxu0 0.0
      %587 = vmatpush1.msra.mxu0 0.0
      %588 = vmatprep.subr.mxu0 0.0
      %589 = vmatpush1.msra.mxu0 0.0
      %590 = vmatprep.subr.mxu0 0.0
      %591 = vmatpush1.msra.mxu0 0.0
      %592 = vmatprep.subr.mxu0 0.0
      %593 = vmatpush1.msra.mxu0 0.0
      %594 = vmatprep.subr.mxu0 0.0
      %595 = vmatpush1.msra.mxu0 0.0
      %596 = vmatprep.subr.mxu0 0.0
      %597 = vmatpush1.msra.mxu0 0.0
      %598 = vmatprep.subr.mxu0 0.0
      %599 = vmatpush1.msra.mxu0 0.0
      %600 = vmatprep.subr.mxu0 0.0
      %601 = vmatpush1.msra.mxu0 0.0
      %602 = vmatprep.subr.mxu0 0.0
      %603 = vmatpush1.msra.mxu0 0.0
      %604 = vmatprep.subr.mxu0 0.0
      %605 = vmatpush1.msra.mxu0 0.0
      %606 = vmatprep.subr.mxu0 0.0
      %607 = vmatpush1.msra.mxu0 0.0
      %608 = vmatprep.subr.mxu0 0.0
      %609 = vmatpush1.msra.mxu0 0.0
      %610 = vmatprep.subr.mxu0 0.0
      %611 = vmatpush1.msra.mxu0 0.0
      %612 = vmatprep.subr.mxu0 0.0
      %613 = vmatpush1.msra.mxu0 0.0
      %614 = vmatprep.subr.mxu0 0.0
      %615 = vmatpush1.msra.mxu0 0.0
      %616 = vmatprep.subr.mxu0 0.0
      %617 = vmatpush1.msra.mxu0 0.0
      %618 = vmatprep.subr.mxu0 0.0
      %619 = vmatpush1.msra.mxu0 0.0
      %620 = vmatprep.subr.mxu0 0.0
      %621 = vmatpush1.msra.mxu0 0.0
      %622 = vmatprep.subr.mxu0 0.0
      %623 = vmatpush1.msra.mxu0 0.0
      %624 = vmatprep.mubr.f32.mxu0 0.0
      %625 = vmatmul.mubr.f32.gmra.mrb[0].mxu0 %v465
      %v626 = vpop.f32.mrb[0].mxu0
      %v627 = vadd.f32 %v461, %v626
      %v628 = vpop.f32.mrb[0].mxu0
      %629 = vmatprep.mubr.f32.mxu0 0.0
      %630 = vmatmul.mubr.f32.gmra.mrb[0].mxu0 %v468
      %v631 = vpop.f32.mrb[0].mxu0
      %v632 = vadd.f32 %v461, %v631
      %v633 = vpop.f32.mrb[0].mxu0
      %634 = vmatprep.mubr.f32.mxu0 0.0
      %635 = vmatmul.mubr.f32.gmra.mrb[0].mxu0 %v471
      %v636 = vpop.f32.mrb[0].mxu0
      %v637 = vadd.f32 %v461, %v636
      %v638 = vpop.f32.mrb[0].mxu0
      %639 = vmatprep.mubr.f32.mxu0 0.0
      %640 = vmatmul.mubr.f32.gmra.mrb[0].mxu0 %v474
      %v641 = vpop.f32.mrb[0].mxu0
      %v642 = vadd.f32 %v461, %v641
      %v643 = vpop.f32.mrb[0].mxu0
      %644 = vmatprep.mubr.f32.mxu0 0.0
      %645 = vmatmul.mubr.f32.gmra.mrb[0].mxu0 %v477
      %v646 = vpop.f32.mrb[0].mxu0
      %v647 = vadd.f32 %v461, %v646
      %v648 = vpop.f32.mrb[0].mxu0
      %649 = vmatprep.mubr.f32.mxu0 0.0
      %650 = vmatmul.mubr.f32.gmra.mrb[0].mxu0 %v480
      %v651 = vpop.f32.mrb[0].mxu0
      %v652 = vadd.f32 %v461, %v651
      %v653 = vpop.f32.mrb[0].mxu0
      %654 = vmatprep.mubr.f32.mxu0 0.0
      %655 = vmatmul.mubr.f32.gmra.mrb[0].mxu0 %v483
      %v656 = vpop.f32.mrb[0].mxu0
      %v657 = vadd.f32 %v461, %v656
      %v658 = vpop.f32.mrb[0].mxu0
      %659 = vmatprep.mubr.f32.mxu0 0.0
      %660 = vmatmul.mubr.f32.gmra.mrb[0].mxu0 %v486
      %v661 = vpop.f32.mrb[0].mxu0
      %v662 = vadd.f32 %v461, %v661
      %v663 = vpop.f32.mrb[0].mxu0
      %664 = vmatprep.mubr.f32.mxu0 0.0
      %665 = vmatmul.mubr.f32.gmra.mrb[0].mxu0 %v489
      %v666 = vpop.f32.mrb[0].mxu0
      %v667 = vadd.f32 %v461, %v666
      %v668 = vpop.f32.mrb[0].mxu0
      %669 = vmatprep.mubr.f32.mxu0 0.0
      %670 = vmatmul.mubr.f32.gmra.mrb[0].mxu0 %v492
      %v671 = vpop.f32.mrb[0].mxu0
      %v672 = vadd.f32 %v461, %v671
      %v673 = vpop.f32.mrb[0].mxu0
      %674 = vmatprep.mubr.f32.mxu0 0.0
      %675 = vmatmul.mubr.f32.gmra.mrb[0].mxu0 %v495
      %v676 = vpop.f32.mrb[0].mxu0
      %v677 = vadd.f32 %v461, %v676
      %v678 = vpop.f32.mrb[0].mxu0
      %679 = vmatprep.mubr.f32.mxu0 0.0
      %680 = vmatmul.mubr.f32.gmra.mrb[0].mxu0 %v498
      %v681 = vpop.f32.mrb[0].mxu0
      %v682 = vadd.f32 %v461, %v681
      %v683 = vpop.f32.mrb[0].mxu0
      %684 = vmatprep.mubr.f32.mxu0 0.0
      %685 = vmatmul.mubr.f32.gmra.mrb[0].mxu0 %v501
      %v686 = vpop.f32.mrb[0].mxu0
      %v687 = vadd.f32 %v461, %v686
      %v688 = vpop.f32.mrb[0].mxu0
      %689 = vmatprep.mubr.f32.mxu0 0.0
      %690 = vmatmul.mubr.f32.gmra.mrb[0].mxu0 %v504
      %v691 = vpop.f32.mrb[0].mxu0
      %v692 = vadd.f32 %v461, %v691
      %v693 = vpop.f32.mrb[0].mxu0
      %694 = vmatprep.mubr.f32.mxu0 0.0
      %695 = vmatmul.mubr.f32.gmra.mrb[0].mxu0 %v507
      %v696 = vpop.f32.mrb[0].mxu0
      %v697 = vadd.f32 %v461, %v696
      %v698 = vpop.f32.mrb[0].mxu0
      %699 = vmatprep.mubr.f32.mxu0 0.0
      %700 = vmatmul.mubr.f32.gmra.mrb[0].mxu0 %v510
      %v701 = vpop.f32.mrb[0].mxu0
      %v702 = vadd.f32 %v461, %v701
      %v703 = vpop.f32.mrb[0].mxu0
      %704 = vmatprep.mubr.f32.mxu0 0.0
      %705 = vmatmul.mubr.f32.gmra.mrb[0].mxu0 %v513
      %v706 = vpop.f32.mrb[0].mxu0
      %v707 = vadd.f32 %v461, %v706
      %v708 = vpop.f32.mrb[0].mxu0
      %709 = vmatprep.mubr.f32.mxu0 0.0
      %710 = vmatmul.mubr.f32.gmra.mrb[0].mxu0 %v516
      %v711 = vpop.f32.mrb[0].mxu0
      %v712 = vadd.f32 %v461, %v711
      %v713 = vpop.f32.mrb[0].mxu0
      %714 = vmatprep.mubr.f32.mxu0 0.0
      %715 = vmatmul.mubr.f32.gmra.mrb[0].mxu0 %v519
      %v716 = vpop.f32.mrb[0].mxu0
      %v717 = vadd.f32 %v461, %v716
      %v718 = vpop.f32.mrb[0].mxu0
      %719 = vmatprep.mubr.f32.mxu0 0.0
      %720 = vmatmul.mubr.f32.gmra.mrb[0].mxu0 %v522
      %v721 = vpop.f32.mrb[0].mxu0
      %v722 = vadd.f32 %v461, %v721
      %v723 = vpop.f32.mrb[0].mxu0
      %724 = vmatprep.mubr.f32.mxu0 0.0
      %725 = vmatmul.mubr.f32.gmra.mrb[0].mxu0 %v525
      %v726 = vpop.f32.mrb[0].mxu0
      %v727 = vadd.f32 %v461, %v726
      %v728 = vpop.f32.mrb[0].mxu0
      %729 = vmatprep.mubr.f32.mxu0 0.0
      %730 = vmatmul.mubr.f32.gmra.mrb[0].mxu0 %v528
      %v731 = vpop.f32.mrb[0].mxu0
      %v732 = vadd.f32 %v461, %v731
      %v733 = vpop.f32.mrb[0].mxu0
      %734 = vmatprep.mubr.f32.mxu0 0.0
      %735 = vmatmul.mubr.f32.gmra.mrb[0].mxu0 %v531
      %v736 = vpop.f32.mrb[0].mxu0
      %v737 = vadd.f32 %v461, %v736
      %v738 = vpop.f32.mrb[0].mxu0
      %739 = vmatprep.mubr.f32.mxu0 0.0
      %740 = vmatmul.mubr.f32.gmra.mrb[0].mxu0 %v534
      %v741 = vpop.f32.mrb[0].mxu0
      %v742 = vadd.f32 %v461, %v741
      %v743 = vpop.f32.mrb[0].mxu0
      %744 = vmatprep.mubr.f32.mxu0 0.0
      %745 = vmatmul.mubr.f32.gmra.mrb[0].mxu0 %v537
      %v746 = vpop.f32.mrb[0].mxu0
      %v747 = vadd.f32 %v461, %v746
      %v748 = vpop.f32.mrb[0].mxu0
      %749 = vmatprep.mubr.f32.mxu0 0.0
      %750 = vmatmul.mubr.f32.gmra.mrb[0].mxu0 %v540
      %v751 = vpop.f32.mrb[0].mxu0
      %v752 = vadd.f32 %v461, %v751
      %v753 = vpop.f32.mrb[0].mxu0
      %754 = vmatprep.mubr.f32.mxu0 0.0
      %755 = vmatmul.mubr.f32.gmra.mrb[0].mxu0 %v543
      %v756 = vpop.f32.mrb[0].mxu0
      %v757 = vadd.f32 %v461, %v756
      %v758 = vpop.f32.mrb[0].mxu0
      %759 = vmatprep.mubr.f32.mxu0 0.0
      %760 = vmatmul.mubr.f32.gmra.mrb[0].mxu0 %v546
      %v761 = vpop.f32.mrb[0].mxu0
      %v762 = vadd.f32 %v461, %v761
      %v763 = vpop.f32.mrb[0].mxu0
      %764 = vmatprep.mubr.f32.mxu0 0.0
      %765 = vmatmul.mubr.f32.gmra.mrb[0].mxu0 %v549
      %v766 = vpop.f32.mrb[0].mxu0
      %v767 = vadd.f32 %v461, %v766
      %v768 = vpop.f32.mrb[0].mxu0
      %769 = vmatprep.mubr.f32.mxu0 0.0
      %770 = vmatmul.mubr.f32.gmra.mrb[0].mxu0 %v552
      %v771 = vpop.f32.mrb[0].mxu0
      %v772 = vadd.f32 %v461, %v771
      %v773 = vpop.f32.mrb[0].mxu0
      %774 = vmatprep.mubr.f32.mxu0 0.0
      %775 = vmatmul.mubr.f32.gmra.mrb[0].mxu0 %v555
      %v776 = vpop.f32.mrb[0].mxu0
      %v777 = vadd.f32 %v461, %v776
      %v778 = vpop.f32.mrb[0].mxu0
      %779 = vmatprep.mubr.f32.mxu0 0.0
      %780 = vmatmul.mubr.f32.gmra.mrb[0].mxu0 %v558
      %v781 = vpop.f32.mrb[0].mxu0
      %v782 = vadd.f32 %v461, %v781
      %v783 = vpop.f32.mrb[0].mxu0
      %784 = vdwg.mxu0
      %v785 = vld [vmem:[%s5] sm:$0xff]
      %v786 = vld [vmem:[%s5 + $0x8] sm:$0xff]
      %v787 = vld [vmem:[%s6] sm:$0x1]
      %v789 = vlaneseq
      %v790 = vshrl.u32 %v789, 7
      %v791 = vsub.s32 0, %v790
      %v792 = vrot.slane %v787, %v791
      %v795 = vsel %vm463, %v446, 0
      %v798 = vsel %vm463, %v447, 0
      %v801 = vsel %vm463, %v448, 0
      %v804 = vsel %vm463, %v449, 0
      %v807 = vsel %vm463, %v450, 0
      %v810 = vsel %vm463, %v451, 0
      %v813 = vsel %vm463, %v452, 0
      %v816 = vsel %vm463, %v453, 0
      %818 = vmatprep.subr.mxu0 0.0
      %819 = vmatpush1.msra.mxu0 %v785
      %820 = vmatprep.subr.mxu0 0.0
      %821 = vmatpush1.msra.mxu0 %v786
      %822 = vmatprep.subr.mxu0 0.0
      %823 = vmatpush1.msra.mxu0 0.0
      %824 = vmatprep.subr.mxu0 0.0
      %825 = vmatpush1.msra.mxu0 0.0
      %826 = vmatprep.subr.mxu0 0.0
      %827 = vmatpush1.msra.mxu0 0.0
      %828 = vmatprep.subr.mxu0 0.0
      %829 = vmatpush1.msra.mxu0 0.0
      %830 = vmatprep.subr.mxu0 0.0
      %831 = vmatpush1.msra.mxu0 0.0
      %832 = vmatprep.subr.mxu0 0.0
      %833 = vmatpush1.msra.mxu0 0.0
      %834 = vmatprep.subr.mxu0 0.0
      %835 = vmatpush1.msra.mxu0 0.0
      %836 = vmatprep.subr.mxu0 0.0
      %837 = vmatpush1.msra.mxu0 0.0
      %838 = vmatprep.subr.mxu0 0.0
      %839 = vmatpush1.msra.mxu0 0.0
      %840 = vmatprep.subr.mxu0 0.0
      %841 = vmatpush1.msra.mxu0 0.0
      %842 = vmatprep.subr.mxu0 0.0
      %843 = vmatpush1.msra.mxu0 0.0
      %844 = vmatprep.subr.mxu0 0.0
      %845 = vmatpush1.msra.mxu0 0.0
      %846 = vmatprep.subr.mxu0 0.0
      %847 = vmatpush1.msra.mxu0 0.0
      %848 = vmatprep.subr.mxu0 0.0
      %849 = vmatpush1.msra.mxu0 0.0
      %850 = vmatprep.subr.mxu0 0.0
      %851 = vmatpush1.msra.mxu0 0.0
      %852 = vmatprep.subr.mxu0 0.0
      %853 = vmatpush1.msra.mxu0 0.0
      %854 = vmatprep.subr.mxu0 0.0
      %855 = vmatpush1.msra.mxu0 0.0
      %856 = vmatprep.subr.mxu0 0.0
      %857 = vmatpush1.msra.mxu0 0.0
      %858 = vmatprep.subr.mxu0 0.0
      %859 = vmatpush1.msra.mxu0 0.0
      %860 = vmatprep.subr.mxu0 0.0
      %861 = vmatpush1.msra.mxu0 0.0
      %862 = vmatprep.subr.mxu0 0.0
      %863 = vmatpush1.msra.mxu0 0.0
      %864 = vmatprep.subr.mxu0 0.0
      %865 = vmatpush1.msra.mxu0 0.0
      %866 = vmatprep.subr.mxu0 0.0
      %867 = vmatpush1.msra.mxu0 0.0
      %868 = vmatprep.subr.mxu0 0.0
      %869 = vmatpush1.msra.mxu0 0.0
      %870 = vmatprep.subr.mxu0 0.0
      %871 = vmatpush1.msra.mxu0 0.0
      %872 = vmatprep.subr.mxu0 0.0
      %873 = vmatpush1.msra.mxu0 0.0
      %874 = vmatprep.subr.mxu0 0.0
      %875 = vmatpush1.msra.mxu0 0.0
      %876 = vmatprep.subr.mxu0 0.0
      %877 = vmatpush1.msra.mxu0 0.0
      %878 = vmatprep.subr.mxu0 0.0
      %879 = vmatpush1.msra.mxu0 0.0
      %880 = vmatprep.subr.mxu0 0.0
      %881 = vmatpush1.msra.mxu0 0.0
      %882 = vmatprep.mubr.f32.mxu0 0.0
      %883 = vmatmul.mubr.f32.gmra.mrb[0].mxu0 %v795
      %v884 = vpop.f32.mrb[0].mxu0
      %v885 = vadd.f32 %v792, %v884
      %v886 = vpop.f32.mrb[0].mxu0
      %887 = vmatprep.mubr.f32.mxu0 0.0
      %888 = vmatmul.mubr.f32.gmra.mrb[0].mxu0 %v798
      %v889 = vpop.f32.mrb[0].mxu0
      %v890 = vadd.f32 %v792, %v889
      %v891 = vpop.f32.mrb[0].mxu0
      %892 = vmatprep.mubr.f32.mxu0 0.0
      %893 = vmatmul.mubr.f32.gmra.mrb[0].mxu0 %v801
      %v894 = vpop.f32.mrb[0].mxu0
      %v895 = vadd.f32 %v792, %v894
      %v896 = vpop.f32.mrb[0].mxu0
      %897 = vmatprep.mubr.f32.mxu0 0.0
      %898 = vmatmul.mubr.f32.gmra.mrb[0].mxu0 %v804
      %v899 = vpop.f32.mrb[0].mxu0
      %v900 = vadd.f32 %v792, %v899
      %v901 = vpop.f32.mrb[0].mxu0
      %902 = vmatprep.mubr.f32.mxu0 0.0
      %903 = vmatmul.mubr.f32.gmra.mrb[0].mxu0 %v807
      %v904 = vpop.f32.mrb[0].mxu0
      %v905 = vadd.f32 %v792, %v904
      %v906 = vpop.f32.mrb[0].mxu0
      %907 = vmatprep.mubr.f32.mxu0 0.0
      %908 = vmatmul.mubr.f32.gmra.mrb[0].mxu0 %v810
      %v909 = vpop.f32.mrb[0].mxu0
      %v910 = vadd.f32 %v792, %v909
      %v911 = vpop.f32.mrb[0].mxu0
      %912 = vmatprep.mubr.f32.mxu0 0.0
      %913 = vmatmul.mubr.f32.gmra.mrb[0].mxu0 %v813
      %v914 = vpop.f32.mrb[0].mxu0
      %v915 = vadd.f32 %v792, %v914
      %v916 = vpop.f32.mrb[0].mxu0
      %917 = vmatprep.mubr.f32.mxu0 0.0
      %918 = vmatmul.mubr.f32.gmra.mrb[0].mxu0 %v816
      %v919 = vpop.f32.mrb[0].mxu0
      %v920 = vadd.f32 %v792, %v919
      %v921 = vpop.f32.mrb[0].mxu0
      %922 = vdwg.mxu0
      %v923 = vadd.f32 %v885, 3.0
      %v924 = vadd.f32 %v890, 3.0
      %v925 = vadd.f32 %v895, 3.0
      %v926 = vadd.f32 %v900, 3.0
      %v927 = vadd.f32 %v905, 3.0
      %v928 = vadd.f32 %v910, 3.0
      %v929 = vadd.f32 %v915, 3.0
      %v930 = vadd.f32 %v920, 3.0
      %v931 = vmax.f32 %v923, 0.0
      %v932 = vmax.f32 %v924, 0.0
      %v933 = vmax.f32 %v925, 0.0
      %v934 = vmax.f32 %v926, 0.0
      %v935 = vmax.f32 %v927, 0.0
      %v936 = vmax.f32 %v928, 0.0
      %v937 = vmax.f32 %v929, 0.0
      %v938 = vmax.f32 %v930, 0.0
      %v939 = vmin.f32 %v931, 6.0
      %v940 = vmin.f32 %v932, 6.0
      %v941 = vmin.f32 %v933, 6.0
      %v942 = vmin.f32 %v934, 6.0
      %v943 = vmin.f32 %v935, 6.0
      %v944 = vmin.f32 %v936, 6.0
      %v945 = vmin.f32 %v937, 6.0
      %v946 = vmin.f32 %v938, 6.0
      %v947 = vmul.f32 %v939, 0.16666667
      %v948 = vmul.f32 %v940, 0.16666667
      %v949 = vmul.f32 %v941, 0.16666667
      %v950 = vmul.f32 %v942, 0.16666667
      %v951 = vmul.f32 %v943, 0.16666667
      %v952 = vmul.f32 %v944, 0.16666667
      %v953 = vmul.f32 %v945, 0.16666667
      %v954 = vmul.f32 %v946, 0.16666667
      %v955 = vld [vmem:[%s7] sm:$0xff]
      %v956 = vld [vmem:[%s7 + $0x8] sm:$0xff]
      %v957 = vld [vmem:[%s8] sm:$0x1]
      %v959 = vlaneseq
      %v960 = vshrl.u32 %v959, 7
      %v961 = vsub.s32 0, %v960
      %v962 = vrot.slane %v957, %v961
      %964 = vmatprep.subr.mxu0 0.0
      %965 = vmatpush1.msra.mxu0 %v955
      %966 = vmatprep.subr.mxu0 0.0
      %967 = vmatpush1.msra.mxu0 %v956
      %968 = vmatprep.subr.mxu0 0.0
      %969 = vmatpush1.msra.mxu0 0.0
      %970 = vmatprep.subr.mxu0 0.0
      %971 = vmatpush1.msra.mxu0 0.0
      %972 = vmatprep.subr.mxu0 0.0
      %973 = vmatpush1.msra.mxu0 0.0
      %974 = vmatprep.subr.mxu0 0.0
      %975 = vmatpush1.msra.mxu0 0.0
      %976 = vmatprep.subr.mxu0 0.0
      %977 = vmatpush1.msra.mxu0 0.0
      %978 = vmatprep.subr.mxu0 0.0
      %979 = vmatpush1.msra.mxu0 0.0
      %980 = vmatprep.subr.mxu0 0.0
      %981 = vmatpush1.msra.mxu0 0.0
      %982 = vmatprep.subr.mxu0 0.0
      %983 = vmatpush1.msra.mxu0 0.0
      %984 = vmatprep.subr.mxu0 0.0
      %985 = vmatpush1.msra.mxu0 0.0
      %986 = vmatprep.subr.mxu0 0.0
      %987 = vmatpush1.msra.mxu0 0.0
      %988 = vmatprep.subr.mxu0 0.0
      %989 = vmatpush1.msra.mxu0 0.0
      %990 = vmatprep.subr.mxu0 0.0
      %991 = vmatpush1.msra.mxu0 0.0
      %992 = vmatprep.subr.mxu0 0.0
      %993 = vmatpush1.msra.mxu0 0.0
      %994 = vmatprep.subr.mxu0 0.0
      %995 = vmatpush1.msra.mxu0 0.0
      %996 = vmatprep.subr.mxu0 0.0
      %997 = vmatpush1.msra.mxu0 0.0
      %998 = vmatprep.subr.mxu0 0.0
      %999 = vmatpush1.msra.mxu0 0.0
      %1000 = vmatprep.subr.mxu0 0.0
      %1001 = vmatpush1.msra.mxu0 0.0
      %1002 = vmatprep.subr.mxu0 0.0
      %1003 = vmatpush1.msra.mxu0 0.0
      %1004 = vmatprep.subr.mxu0 0.0
      %1005 = vmatpush1.msra.mxu0 0.0
      %1006 = vmatprep.subr.mxu0 0.0
      %1007 = vmatpush1.msra.mxu0 0.0
      %1008 = vmatprep.subr.mxu0 0.0
      %1009 = vmatpush1.msra.mxu0 0.0
      %1010 = vmatprep.subr.mxu0 0.0
      %1011 = vmatpush1.msra.mxu0 0.0
      %1012 = vmatprep.subr.mxu0 0.0
      %1013 = vmatpush1.msra.mxu0 0.0
      %1014 = vmatprep.subr.mxu0 0.0
      %1015 = vmatpush1.msra.mxu0 0.0
      %1016 = vmatprep.subr.mxu0 0.0
      %1017 = vmatpush1.msra.mxu0 0.0
      %1018 = vmatprep.subr.mxu0 0.0
      %1019 = vmatpush1.msra.mxu0 0.0
      %1020 = vmatprep.subr.mxu0 0.0
      %1021 = vmatpush1.msra.mxu0 0.0
      %1022 = vmatprep.subr.mxu0 0.0
      %1023 = vmatpush1.msra.mxu0 0.0
      %1024 = vmatprep.subr.mxu0 0.0
      %1025 = vmatpush1.msra.mxu0 0.0
      %1026 = vmatprep.subr.mxu0 0.0
      %1027 = vmatpush1.msra.mxu0 0.0
      %1028 = vmatprep.mubr.f32.mxu0 0.0
      %1029 = vmatmul.mubr.f32.gmra.mrb[0].mxu0 %v795
      %v1030 = vpop.f32.mrb[0].mxu0
      %v1031 = vadd.f32 %v962, %v1030
      %v1032 = vpop.f32.mrb[0].mxu0
      %1033 = vmatprep.mubr.f32.mxu0 0.0
      %1034 = vmatmul.mubr.f32.gmra.mrb[0].mxu0 %v798
      %v1035 = vpop.f32.mrb[0].mxu0
      %v1036 = vadd.f32 %v962, %v1035
      %v1037 = vpop.f32.mrb[0].mxu0
      %1038 = vmatprep.mubr.f32.mxu0 0.0
      %1039 = vmatmul.mubr.f32.gmra.mrb[0].mxu0 %v801
      %v1040 = vpop.f32.mrb[0].mxu0
      %v1041 = vadd.f32 %v962, %v1040
      %v1042 = vpop.f32.mrb[0].mxu0
      %1043 = vmatprep.mubr.f32.mxu0 0.0
      %1044 = vmatmul.mubr.f32.gmra.mrb[0].mxu0 %v804
      %v1045 = vpop.f32.mrb[0].mxu0
      %v1046 = vadd.f32 %v962, %v1045
      %v1047 = vpop.f32.mrb[0].mxu0
      %1048 = vmatprep.mubr.f32.mxu0 0.0
      %1049 = vmatmul.mubr.f32.gmra.mrb[0].mxu0 %v807
      %v1050 = vpop.f32.mrb[0].mxu0
      %v1051 = vadd.f32 %v962, %v1050
      %v1052 = vpop.f32.mrb[0].mxu0
      %1053 = vmatprep.mubr.f32.mxu0 0.0
      %1054 = vmatmul.mubr.f32.gmra.mrb[0].mxu0 %v810
      %v1055 = vpop.f32.mrb[0].mxu0
      %v1056 = vadd.f32 %v962, %v1055
      %v1057 = vpop.f32.mrb[0].mxu0
      %1058 = vmatprep.mubr.f32.mxu0 0.0
      %1059 = vmatmul.mubr.f32.gmra.mrb[0].mxu0 %v813
      %v1060 = vpop.f32.mrb[0].mxu0
      %v1061 = vadd.f32 %v962, %v1060
      %v1062 = vpop.f32.mrb[0].mxu0
      %1063 = vmatprep.mubr.f32.mxu0 0.0
      %1064 = vmatmul.mubr.f32.gmra.mrb[0].mxu0 %v816
      %v1065 = vpop.f32.mrb[0].mxu0
      %v1066 = vadd.f32 %v962, %v1065
      %v1067 = vpop.f32.mrb[0].mxu0
      %1068 = vdwg.mxu0
      %v1069 = vld [vmem:[%s402] sm:$0xff]
      %v1070 = vld [vmem:[%s402 + $0x8] sm:$0xff]
      %v1071 = vld [vmem:[%s402 + $0x10] sm:$0xff]
      %v1072 = vld [vmem:[%s402 + $0x18] sm:$0xff]
      %v1073 = vld [vmem:[%s402 + $0x20] sm:$0xff]
      %v1074 = vld [vmem:[%s402 + $0x28] sm:$0xff]
      %v1075 = vld [vmem:[%s402 + $0x30] sm:$0xff]
      %v1076 = vld [vmem:[%s402 + $0x38] sm:$0xff]
      %v1077 = vld [vmem:[%s402 + $0x40] sm:$0xff]
      %v1078 = vld [vmem:[%s402 + $0x48] sm:$0xff]
      %v1079 = vld [vmem:[%s402 + $0x50] sm:$0xff]
      %v1080 = vld [vmem:[%s402 + $0x58] sm:$0xff]
      %v1081 = vld [vmem:[%s402 + $0x60] sm:$0xff]
      %v1082 = vld [vmem:[%s402 + $0x68] sm:$0xff]
      %v1083 = vld [vmem:[%s402 + $0x70] sm:$0xff]
      %v1084 = vld [vmem:[%s402 + $0x78] sm:$0xff]
      %v1085 = vld [vmem:[%s402 + $0x80] sm:$0xff]
      %v1086 = vld [vmem:[%s402 + $0x88] sm:$0xff]
      %v1087 = vld [vmem:[%s402 + $0x90] sm:$0xff]
      %v1088 = vld [vmem:[%s402 + $0x98] sm:$0xff]
      %v1089 = vld [vmem:[%s402 + $0xa0] sm:$0xff]
      %v1090 = vld [vmem:[%s402 + $0xa8] sm:$0xff]
      %v1091 = vld [vmem:[%s402 + $0xb0] sm:$0xff]
      %v1092 = vld [vmem:[%s402 + $0xb8] sm:$0xff]
      %v1093 = vld [vmem:[%s402 + $0xc0] sm:$0xff]
      %v1094 = vld [vmem:[%s402 + $0xc8] sm:$0xff]
      %v1095 = vld [vmem:[%s402 + $0xd0] sm:$0xff]
      %v1096 = vld [vmem:[%s402 + $0xd8] sm:$0xff]
      %v1097 = vld [vmem:[%s402 + $0xe0] sm:$0xff]
      %v1098 = vld [vmem:[%s402 + $0xe8] sm:$0xff]
      %v1099 = vld [vmem:[%s402 + $0xf0] sm:$0xff]
      %v1100 = vld [vmem:[%s402 + $0xf8] sm:$0xff]
      %vm1101 = vcmask 523264
      %v1103 = vsel %vm1101, %v1069, 0
      %v1106 = vsel %vm1101, %v1070, 0
      %v1109 = vsel %vm1101, %v1071, 0
      %v1112 = vsel %vm1101, %v1072, 0
      %v1115 = vsel %vm1101, %v1073, 0
      %v1118 = vsel %vm1101, %v1074, 0
      %v1121 = vsel %vm1101, %v1075, 0
      %v1124 = vsel %vm1101, %v1076, 0
      %v1127 = vsel %vm1101, %v1077, 0
      %v1130 = vsel %vm1101, %v1078, 0
      %v1133 = vsel %vm1101, %v1079, 0
      %v1136 = vsel %vm1101, %v1080, 0
      %v1139 = vsel %vm1101, %v1081, 0
      %v1142 = vsel %vm1101, %v1082, 0
      %v1145 = vsel %vm1101, %v1083, 0
      %v1148 = vsel %vm1101, %v1084, 0
      %v1151 = vsel %vm1101, %v1085, 0
      %v1154 = vsel %vm1101, %v1086, 0
      %v1157 = vsel %vm1101, %v1087, 0
      %v1160 = vsel %vm1101, %v1088, 0
      %v1163 = vsel %vm1101, %v1089, 0
      %v1166 = vsel %vm1101, %v1090, 0
      %v1169 = vsel %vm1101, %v1091, 0
      %v1172 = vsel %vm1101, %v1092, 0
      %v1175 = vsel %vm1101, %v1093, 0
      %v1178 = vsel %vm1101, %v1094, 0
      %v1181 = vsel %vm1101, %v1095, 0
      %v1184 = vsel %vm1101, %v1096, 0
      %v1187 = vsel %vm1101, %v1097, 0
      %v1190 = vsel %vm1101, %v1098, 0
      %v1193 = vsel %vm1101, %v1099, 0
      %v1196 = vsel %vm1101, %v1100, 0
      %1198 = vmatprep.subr.mxu0 0.0
      %1199 = vmatpush1.msra.mxu0 %v947
      %1200 = vmatprep.subr.mxu0 0.0
      %1201 = vmatpush1.msra.mxu0 %v948
      %1202 = vmatprep.subr.mxu0 0.0
      %1203 = vmatpush1.msra.mxu0 %v949
      %1204 = vmatprep.subr.mxu0 0.0
      %1205 = vmatpush1.msra.mxu0 %v950
      %1206 = vmatprep.subr.mxu0 0.0
      %1207 = vmatpush1.msra.mxu0 %v951
      %1208 = vmatprep.subr.mxu0 0.0
      %1209 = vmatpush1.msra.mxu0 %v952
      %1210 = vmatprep.subr.mxu0 0.0
      %1211 = vmatpush1.msra.mxu0 %v953
      %1212 = vmatprep.subr.mxu0 0.0
      %1213 = vmatpush1.msra.mxu0 %v954
      %1214 = vmatprep.subr.mxu0 0.0
      %1215 = vmatpush1.msra.mxu0 0.0
      %1216 = vmatprep.subr.mxu0 0.0
      %1217 = vmatpush1.msra.mxu0 0.0
      %1218 = vmatprep.subr.mxu0 0.0
      %1219 = vmatpush1.msra.mxu0 0.0
      %1220 = vmatprep.subr.mxu0 0.0
      %1221 = vmatpush1.msra.mxu0 0.0
      %1222 = vmatprep.subr.mxu0 0.0
      %1223 = vmatpush1.msra.mxu0 0.0
      %1224 = vmatprep.subr.mxu0 0.0
      %1225 = vmatpush1.msra.mxu0 0.0
      %1226 = vmatprep.subr.mxu0 0.0
      %1227 = vmatpush1.msra.mxu0 0.0
      %1228 = vmatprep.subr.mxu0 0.0
      %1229 = vmatpush1.msra.mxu0 0.0
      %1230 = vmatprep.subr.mxu0 0.0
      %1231 = vmatpush1.msra.mxu0 0.0
      %1232 = vmatprep.subr.mxu0 0.0
      %1233 = vmatpush1.msra.mxu0 0.0
      %1234 = vmatprep.subr.mxu0 0.0
      %1235 = vmatpush1.msra.mxu0 0.0
      %1236 = vmatprep.subr.mxu0 0.0
      %1237 = vmatpush1.msra.mxu0 0.0
      %1238 = vmatprep.subr.mxu0 0.0
      %1239 = vmatpush1.msra.mxu0 0.0
      %1240 = vmatprep.subr.mxu0 0.0
      %1241 = vmatpush1.msra.mxu0 0.0
      %1242 = vmatprep.subr.mxu0 0.0
      %1243 = vmatpush1.msra.mxu0 0.0
      %1244 = vmatprep.subr.mxu0 0.0
      %1245 = vmatpush1.msra.mxu0 0.0
      %1246 = vmatprep.subr.mxu0 0.0
      %1247 = vmatpush1.msra.mxu0 0.0
      %1248 = vmatprep.subr.mxu0 0.0
      %1249 = vmatpush1.msra.mxu0 0.0
      %1250 = vmatprep.subr.mxu0 0.0
      %1251 = vmatpush1.msra.mxu0 0.0
      %1252 = vmatprep.subr.mxu0 0.0
      %1253 = vmatpush1.msra.mxu0 0.0
      %1254 = vmatprep.subr.mxu0 0.0
      %1255 = vmatpush1.msra.mxu0 0.0
      %1256 = vmatprep.subr.mxu0 0.0
      %1257 = vmatpush1.msra.mxu0 0.0
      %1258 = vmatprep.subr.mxu0 0.0
      %1259 = vmatpush1.msra.mxu0 0.0
      %1260 = vmatprep.subr.mxu0 0.0
      %1261 = vmatpush1.msra.mxu0 0.0
      %1262 = vmatprep.mubr.f32.mxu0 0.0
      %1263 = vmatmul.mubr.f32.gmra.mrb[0].mxu0 %v1103
      %v1264 = vpop.f32.mrb[0].mxu0
      %v1265 = vadd.f32 0.0, %v1264
      %v1266 = vpop.f32.mrb[0].mxu0
      %1267 = vmatprep.mubr.f32.mxu0 0.0
      %1268 = vmatmul.mubr.f32.gmra.mrb[0].mxu0 %v1106
      %v1269 = vpop.f32.mrb[0].mxu0
      %v1270 = vadd.f32 0.0, %v1269
      %v1271 = vpop.f32.mrb[0].mxu0
      %1272 = vmatprep.mubr.f32.mxu0 0.0
      %1273 = vmatmul.mubr.f32.gmra.mrb[0].mxu0 %v1109
      %v1274 = vpop.f32.mrb[0].mxu0
      %v1275 = vadd.f32 0.0, %v1274
      %v1276 = vpop.f32.mrb[0].mxu0
      %1277 = vmatprep.mubr.f32.mxu0 0.0
      %1278 = vmatmul.mubr.f32.gmra.mrb[0].mxu0 %v1112
      %v1279 = vpop.f32.mrb[0].mxu0
      %v1280 = vadd.f32 0.0, %v1279
      %v1281 = vpop.f32.mrb[0].mxu0
      %1282 = vmatprep.mubr.f32.mxu0 0.0
      %1283 = vmatmul.mubr.f32.gmra.mrb[0].mxu0 %v1115
      %v1284 = vpop.f32.mrb[0].mxu0
      %v1285 = vadd.f32 0.0, %v1284
      %v1286 = vpop.f32.mrb[0].mxu0
      %1287 = vmatprep.mubr.f32.mxu0 0.0
      %1288 = vmatmul.mubr.f32.gmra.mrb[0].mxu0 %v1118
      %v1289 = vpop.f32.mrb[0].mxu0
      %v1290 = vadd.f32 0.0, %v1289
      %v1291 = vpop.f32.mrb[0].mxu0
      %1292 = vmatprep.mubr.f32.mxu0 0.0
      %1293 = vmatmul.mubr.f32.gmra.mrb[0].mxu0 %v1121
      %v1294 = vpop.f32.mrb[0].mxu0
      %v1295 = vadd.f32 0.0, %v1294
      %v1296 = vpop.f32.mrb[0].mxu0
      %1297 = vmatprep.mubr.f32.mxu0 0.0
      %1298 = vmatmul.mubr.f32.gmra.mrb[0].mxu0 %v1124
      %v1299 = vpop.f32.mrb[0].mxu0
      %v1300 = vadd.f32 0.0, %v1299
      %v1301 = vpop.f32.mrb[0].mxu0
      %1302 = vmatprep.mubr.f32.mxu0 0.0
      %1303 = vmatmul.mubr.f32.gmra.mrb[0].mxu0 %v1127
      %v1304 = vpop.f32.mrb[0].mxu0
      %v1305 = vadd.f32 0.0, %v1304
      %v1306 = vpop.f32.mrb[0].mxu0
      %1307 = vmatprep.mubr.f32.mxu0 0.0
      %1308 = vmatmul.mubr.f32.gmra.mrb[0].mxu0 %v1130
      %v1309 = vpop.f32.mrb[0].mxu0
      %v1310 = vadd.f32 0.0, %v1309
      %v1311 = vpop.f32.mrb[0].mxu0
      %1312 = vmatprep.mubr.f32.mxu0 0.0
      %1313 = vmatmul.mubr.f32.gmra.mrb[0].mxu0 %v1133
      %v1314 = vpop.f32.mrb[0].mxu0
      %v1315 = vadd.f32 0.0, %v1314
      %v1316 = vpop.f32.mrb[0].mxu0
      %1317 = vmatprep.mubr.f32.mxu0 0.0
      %1318 = vmatmul.mubr.f32.gmra.mrb[0].mxu0 %v1136
      %v1319 = vpop.f32.mrb[0].mxu0
      %v1320 = vadd.f32 0.0, %v1319
      %v1321 = vpop.f32.mrb[0].mxu0
      %1322 = vmatprep.mubr.f32.mxu0 0.0
      %1323 = vmatmul.mubr.f32.gmra.mrb[0].mxu0 %v1139
      %v1324 = vpop.f32.mrb[0].mxu0
      %v1325 = vadd.f32 0.0, %v1324
      %v1326 = vpop.f32.mrb[0].mxu0
      %1327 = vmatprep.mubr.f32.mxu0 0.0
      %1328 = vmatmul.mubr.f32.gmra.mrb[0].mxu0 %v1142
      %v1329 = vpop.f32.mrb[0].mxu0
      %v1330 = vadd.f32 0.0, %v1329
      %v1331 = vpop.f32.mrb[0].mxu0
      %1332 = vmatprep.mubr.f32.mxu0 0.0
      %1333 = vmatmul.mubr.f32.gmra.mrb[0].mxu0 %v1145
      %v1334 = vpop.f32.mrb[0].mxu0
      %v1335 = vadd.f32 0.0, %v1334
      %v1336 = vpop.f32.mrb[0].mxu0
      %1337 = vmatprep.mubr.f32.mxu0 0.0
      %1338 = vmatmul.mubr.f32.gmra.mrb[0].mxu0 %v1148
      %v1339 = vpop.f32.mrb[0].mxu0
      %v1340 = vadd.f32 0.0, %v1339
      %v1341 = vpop.f32.mrb[0].mxu0
      %1342 = vmatprep.mubr.f32.mxu0 0.0
      %1343 = vmatmul.mubr.f32.gmra.mrb[0].mxu0 %v1151
      %v1344 = vpop.f32.mrb[0].mxu0
      %v1345 = vadd.f32 0.0, %v1344
      %v1346 = vpop.f32.mrb[0].mxu0
      %1347 = vmatprep.mubr.f32.mxu0 0.0
      %1348 = vmatmul.mubr.f32.gmra.mrb[0].mxu0 %v1154
      %v1349 = vpop.f32.mrb[0].mxu0
      %v1350 = vadd.f32 0.0, %v1349
      %v1351 = vpop.f32.mrb[0].mxu0
      %1352 = vmatprep.mubr.f32.mxu0 0.0
      %1353 = vmatmul.mubr.f32.gmra.mrb[0].mxu0 %v1157
      %v1354 = vpop.f32.mrb[0].mxu0
      %v1355 = vadd.f32 0.0, %v1354
      %v1356 = vpop.f32.mrb[0].mxu0
      %1357 = vmatprep.mubr.f32.mxu0 0.0
      %1358 = vmatmul.mubr.f32.gmra.mrb[0].mxu0 %v1160
      %v1359 = vpop.f32.mrb[0].mxu0
      %v1360 = vadd.f32 0.0, %v1359
      %v1361 = vpop.f32.mrb[0].mxu0
      %1362 = vmatprep.mubr.f32.mxu0 0.0
      %1363 = vmatmul.mubr.f32.gmra.mrb[0].mxu0 %v1163
      %v1364 = vpop.f32.mrb[0].mxu0
      %v1365 = vadd.f32 0.0, %v1364
      %v1366 = vpop.f32.mrb[0].mxu0
      %1367 = vmatprep.mubr.f32.mxu0 0.0
      %1368 = vmatmul.mubr.f32.gmra.mrb[0].mxu0 %v1166
      %v1369 = vpop.f32.mrb[0].mxu0
      %v1370 = vadd.f32 0.0, %v1369
      %v1371 = vpop.f32.mrb[0].mxu0
      %1372 = vmatprep.mubr.f32.mxu0 0.0
      %1373 = vmatmul.mubr.f32.gmra.mrb[0].mxu0 %v1169
      %v1374 = vpop.f32.mrb[0].mxu0
      %v1375 = vadd.f32 0.0, %v1374
      %v1376 = vpop.f32.mrb[0].mxu0
      %1377 = vmatprep.mubr.f32.mxu0 0.0
      %1378 = vmatmul.mubr.f32.gmra.mrb[0].mxu0 %v1172
      %v1379 = vpop.f32.mrb[0].mxu0
      %v1380 = vadd.f32 0.0, %v1379
      %v1381 = vpop.f32.mrb[0].mxu0
      %1382 = vmatprep.mubr.f32.mxu0 0.0
      %1383 = vmatmul.mubr.f32.gmra.mrb[0].mxu0 %v1175
      %v1384 = vpop.f32.mrb[0].mxu0
      %v1385 = vadd.f32 0.0, %v1384
      %v1386 = vpop.f32.mrb[0].mxu0
      %1387 = vmatprep.mubr.f32.mxu0 0.0
      %1388 = vmatmul.mubr.f32.gmra.mrb[0].mxu0 %v1178
      %v1389 = vpop.f32.mrb[0].mxu0
      %v1390 = vadd.f32 0.0, %v1389
      %v1391 = vpop.f32.mrb[0].mxu0
      %1392 = vmatprep.mubr.f32.mxu0 0.0
      %1393 = vmatmul.mubr.f32.gmra.mrb[0].mxu0 %v1181
      %v1394 = vpop.f32.mrb[0].mxu0
      %v1395 = vadd.f32 0.0, %v1394
      %v1396 = vpop.f32.mrb[0].mxu0
      %1397 = vmatprep.mubr.f32.mxu0 0.0
      %1398 = vmatmul.mubr.f32.gmra.mrb[0].mxu0 %v1184
      %v1399 = vpop.f32.mrb[0].mxu0
      %v1400 = vadd.f32 0.0, %v1399
      %v1401 = vpop.f32.mrb[0].mxu0
      %1402 = vmatprep.mubr.f32.mxu0 0.0
      %1403 = vmatmul.mubr.f32.gmra.mrb[0].mxu0 %v1187
      %v1404 = vpop.f32.mrb[0].mxu0
      %v1405 = vadd.f32 0.0, %v1404
      %v1406 = vpop.f32.mrb[0].mxu0
      %1407 = vmatprep.mubr.f32.mxu0 0.0
      %1408 = vmatmul.mubr.f32.gmra.mrb[0].mxu0 %v1190
      %v1409 = vpop.f32.mrb[0].mxu0
      %v1410 = vadd.f32 0.0, %v1409
      %v1411 = vpop.f32.mrb[0].mxu0
      %1412 = vmatprep.mubr.f32.mxu0 0.0
      %1413 = vmatmul.mubr.f32.gmra.mrb[0].mxu0 %v1193
      %v1414 = vpop.f32.mrb[0].mxu0
      %v1415 = vadd.f32 0.0, %v1414
      %v1416 = vpop.f32.mrb[0].mxu0
      %1417 = vmatprep.mubr.f32.mxu0 0.0
      %1418 = vmatmul.mubr.f32.gmra.mrb[0].mxu0 %v1196
      %v1419 = vpop.f32.mrb[0].mxu0
      %v1420 = vadd.f32 0.0, %v1419
      %v1421 = vpop.f32.mrb[0].mxu0
      %1422 = vdwg.mxu0
      %1423 = vmatprep.subr.mxu0 0.0
      %1424 = vmatpush1.msra.mxu0 %v1031
      %1425 = vmatprep.subr.mxu0 0.0
      %1426 = vmatpush1.msra.mxu0 %v1036
      %1427 = vmatprep.subr.mxu0 0.0
      %1428 = vmatpush1.msra.mxu0 %v1041
      %1429 = vmatprep.subr.mxu0 0.0
      %1430 = vmatpush1.msra.mxu0 %v1046
      %1431 = vmatprep.subr.mxu0 0.0
      %1432 = vmatpush1.msra.mxu0 %v1051
      %1433 = vmatprep.subr.mxu0 0.0
      %1434 = vmatpush1.msra.mxu0 %v1056
      %1435 = vmatprep.subr.mxu0 0.0
      %1436 = vmatpush1.msra.mxu0 %v1061
      %1437 = vmatprep.subr.mxu0 0.0
      %1438 = vmatpush1.msra.mxu0 %v1066
      %1439 = vmatprep.subr.mxu0 0.0
      %1440 = vmatpush1.msra.mxu0 0.0
      %1441 = vmatprep.subr.mxu0 0.0
      %1442 = vmatpush1.msra.mxu0 0.0
      %1443 = vmatprep.subr.mxu0 0.0
      %1444 = vmatpush1.msra.mxu0 0.0
      %1445 = vmatprep.subr.mxu0 0.0
      %1446 = vmatpush1.msra.mxu0 0.0
      %1447 = vmatprep.subr.mxu0 0.0
      %1448 = vmatpush1.msra.mxu0 0.0
      %1449 = vmatprep.subr.mxu0 0.0
      %1450 = vmatpush1.msra.mxu0 0.0
      %1451 = vmatprep.subr.mxu0 0.0
      %1452 = vmatpush1.msra.mxu0 0.0
      %1453 = vmatprep.subr.mxu0 0.0
      %1454 = vmatpush1.msra.mxu0 0.0
      %1455 = vmatprep.subr.mxu0 0.0
      %1456 = vmatpush1.msra.mxu0 0.0
      %1457 = vmatprep.subr.mxu0 0.0
      %1458 = vmatpush1.msra.mxu0 0.0
      %1459 = vmatprep.subr.mxu0 0.0
      %1460 = vmatpush1.msra.mxu0 0.0
      %1461 = vmatprep.subr.mxu0 0.0
      %1462 = vmatpush1.msra.mxu0 0.0
      %1463 = vmatprep.subr.mxu0 0.0
      %1464 = vmatpush1.msra.mxu0 0.0
      %1465 = vmatprep.subr.mxu0 0.0
      %1466 = vmatpush1.msra.mxu0 0.0
      %1467 = vmatprep.subr.mxu0 0.0
      %1468 = vmatpush1.msra.mxu0 0.0
      %1469 = vmatprep.subr.mxu0 0.0
      %1470 = vmatpush1.msra.mxu0 0.0
      %1471 = vmatprep.subr.mxu0 0.0
      %1472 = vmatpush1.msra.mxu0 0.0
      %1473 = vmatprep.subr.mxu0 0.0
      %1474 = vmatpush1.msra.mxu0 0.0
      %1475 = vmatprep.subr.mxu0 0.0
      %1476 = vmatpush1.msra.mxu0 0.0
      %1477 = vmatprep.subr.mxu0 0.0
      %1478 = vmatpush1.msra.mxu0 0.0
      %1479 = vmatprep.subr.mxu0 0.0
      %1480 = vmatpush1.msra.mxu0 0.0
      %1481 = vmatprep.subr.mxu0 0.0
      %1482 = vmatpush1.msra.mxu0 0.0
      %1483 = vmatprep.subr.mxu0 0.0
      %1484 = vmatpush1.msra.mxu0 0.0
      %1485 = vmatprep.subr.mxu0 0.0
      %1486 = vmatpush1.msra.mxu0 0.0
      %1487 = vmatprep.mubr.f32.mxu0 0.0
      %1488 = vmatmul.mubr.f32.gmra.mrb[0].mxu0 %v1103
      %v1489 = vpop.f32.mrb[0].mxu0
      %v1490 = vadd.f32 0.0, %v1489
      %v1491 = vpop.f32.mrb[0].mxu0
      %1492 = vmatprep.mubr.f32.mxu0 0.0
      %1493 = vmatmul.mubr.f32.gmra.mrb[0].mxu0 %v1106
      %v1494 = vpop.f32.mrb[0].mxu0
      %v1495 = vadd.f32 0.0, %v1494
      %v1496 = vpop.f32.mrb[0].mxu0
      %1497 = vmatprep.mubr.f32.mxu0 0.0
      %1498 = vmatmul.mubr.f32.gmra.mrb[0].mxu0 %v1109
      %v1499 = vpop.f32.mrb[0].mxu0
      %v1500 = vadd.f32 0.0, %v1499
      %v1501 = vpop.f32.mrb[0].mxu0
      %1502 = vmatprep.mubr.f32.mxu0 0.0
      %1503 = vmatmul.mubr.f32.gmra.mrb[0].mxu0 %v1112
      %v1504 = vpop.f32.mrb[0].mxu0
      %v1505 = vadd.f32 0.0, %v1504
      %v1506 = vpop.f32.mrb[0].mxu0
      %1507 = vmatprep.mubr.f32.mxu0 0.0
      %1508 = vmatmul.mubr.f32.gmra.mrb[0].mxu0 %v1115
      %v1509 = vpop.f32.mrb[0].mxu0
      %v1510 = vadd.f32 0.0, %v1509
      %v1511 = vpop.f32.mrb[0].mxu0
      %1512 = vmatprep.mubr.f32.mxu0 0.0
      %1513 = vmatmul.mubr.f32.gmra.mrb[0].mxu0 %v1118
      %v1514 = vpop.f32.mrb[0].mxu0
      %v1515 = vadd.f32 0.0, %v1514
      %v1516 = vpop.f32.mrb[0].mxu0
      %1517 = vmatprep.mubr.f32.mxu0 0.0
      %1518 = vmatmul.mubr.f32.gmra.mrb[0].mxu0 %v1121
      %v1519 = vpop.f32.mrb[0].mxu0
      %v1520 = vadd.f32 0.0, %v1519
      %v1521 = vpop.f32.mrb[0].mxu0
      %1522 = vmatprep.mubr.f32.mxu0 0.0
      %1523 = vmatmul.mubr.f32.gmra.mrb[0].mxu0 %v1124
      %v1524 = vpop.f32.mrb[0].mxu0
      %v1525 = vadd.f32 0.0, %v1524
      %v1526 = vpop.f32.mrb[0].mxu0
      %1527 = vmatprep.mubr.f32.mxu0 0.0
      %1528 = vmatmul.mubr.f32.gmra.mrb[0].mxu0 %v1127
      %v1529 = vpop.f32.mrb[0].mxu0
      %v1530 = vadd.f32 0.0, %v1529
      %v1531 = vpop.f32.mrb[0].mxu0
      %1532 = vmatprep.mubr.f32.mxu0 0.0
      %1533 = vmatmul.mubr.f32.gmra.mrb[0].mxu0 %v1130
      %v1534 = vpop.f32.mrb[0].mxu0
      %v1535 = vadd.f32 0.0, %v1534
      %v1536 = vpop.f32.mrb[0].mxu0
      %1537 = vmatprep.mubr.f32.mxu0 0.0
      %1538 = vmatmul.mubr.f32.gmra.mrb[0].mxu0 %v1133
      %v1539 = vpop.f32.mrb[0].mxu0
      %v1540 = vadd.f32 0.0, %v1539
      %v1541 = vpop.f32.mrb[0].mxu0
      %1542 = vmatprep.mubr.f32.mxu0 0.0
      %1543 = vmatmul.mubr.f32.gmra.mrb[0].mxu0 %v1136
      %v1544 = vpop.f32.mrb[0].mxu0
      %v1545 = vadd.f32 0.0, %v1544
      %v1546 = vpop.f32.mrb[0].mxu0
      %1547 = vmatprep.mubr.f32.mxu0 0.0
      %1548 = vmatmul.mubr.f32.gmra.mrb[0].mxu0 %v1139
      %v1549 = vpop.f32.mrb[0].mxu0
      %v1550 = vadd.f32 0.0, %v1549
      %v1551 = vpop.f32.mrb[0].mxu0
      %1552 = vmatprep.mubr.f32.mxu0 0.0
      %1553 = vmatmul.mubr.f32.gmra.mrb[0].mxu0 %v1142
      %v1554 = vpop.f32.mrb[0].mxu0
      %v1555 = vadd.f32 0.0, %v1554
      %v1556 = vpop.f32.mrb[0].mxu0
      %1557 = vmatprep.mubr.f32.mxu0 0.0
      %1558 = vmatmul.mubr.f32.gmra.mrb[0].mxu0 %v1145
      %v1559 = vpop.f32.mrb[0].mxu0
      %v1560 = vadd.f32 0.0, %v1559
      %v1561 = vpop.f32.mrb[0].mxu0
      %1562 = vmatprep.mubr.f32.mxu0 0.0
      %1563 = vmatmul.mubr.f32.gmra.mrb[0].mxu0 %v1148
      %v1564 = vpop.f32.mrb[0].mxu0
      %v1565 = vadd.f32 0.0, %v1564
      %v1566 = vpop.f32.mrb[0].mxu0
      %1567 = vmatprep.mubr.f32.mxu0 0.0
      %1568 = vmatmul.mubr.f32.gmra.mrb[0].mxu0 %v1151
      %v1569 = vpop.f32.mrb[0].mxu0
      %v1570 = vadd.f32 0.0, %v1569
      %v1571 = vpop.f32.mrb[0].mxu0
      %1572 = vmatprep.mubr.f32.mxu0 0.0
      %1573 = vmatmul.mubr.f32.gmra.mrb[0].mxu0 %v1154
      %v1574 = vpop.f32.mrb[0].mxu0
      %v1575 = vadd.f32 0.0, %v1574
      %v1576 = vpop.f32.mrb[0].mxu0
      %1577 = vmatprep.mubr.f32.mxu0 0.0
      %1578 = vmatmul.mubr.f32.gmra.mrb[0].mxu0 %v1157
      %v1579 = vpop.f32.mrb[0].mxu0
      %v1580 = vadd.f32 0.0, %v1579
      %v1581 = vpop.f32.mrb[0].mxu0
      %1582 = vmatprep.mubr.f32.mxu0 0.0
      %1583 = vmatmul.mubr.f32.gmra.mrb[0].mxu0 %v1160
      %v1584 = vpop.f32.mrb[0].mxu0
      %v1585 = vadd.f32 0.0, %v1584
      %v1586 = vpop.f32.mrb[0].mxu0
      %1587 = vmatprep.mubr.f32.mxu0 0.0
      %1588 = vmatmul.mubr.f32.gmra.mrb[0].mxu0 %v1163
      %v1589 = vpop.f32.mrb[0].mxu0
      %v1590 = vadd.f32 0.0, %v1589
      %v1591 = vpop.f32.mrb[0].mxu0
      %1592 = vmatprep.mubr.f32.mxu0 0.0
      %1593 = vmatmul.mubr.f32.gmra.mrb[0].mxu0 %v1166
      %v1594 = vpop.f32.mrb[0].mxu0
      %v1595 = vadd.f32 0.0, %v1594
      %v1596 = vpop.f32.mrb[0].mxu0
      %1597 = vmatprep.mubr.f32.mxu0 0.0
      %1598 = vmatmul.mubr.f32.gmra.mrb[0].mxu0 %v1169
      %v1599 = vpop.f32.mrb[0].mxu0
      %v1600 = vadd.f32 0.0, %v1599
      %v1601 = vpop.f32.mrb[0].mxu0
      %1602 = vmatprep.mubr.f32.mxu0 0.0
      %1603 = vmatmul.mubr.f32.gmra.mrb[0].mxu0 %v1172
      %v1604 = vpop.f32.mrb[0].mxu0
      %v1605 = vadd.f32 0.0, %v1604
      %v1606 = vpop.f32.mrb[0].mxu0
      %1607 = vmatprep.mubr.f32.mxu0 0.0
      %1608 = vmatmul.mubr.f32.gmra.mrb[0].mxu0 %v1175
      %v1609 = vpop.f32.mrb[0].mxu0
      %v1610 = vadd.f32 0.0, %v1609
      %v1611 = vpop.f32.mrb[0].mxu0
      %1612 = vmatprep.mubr.f32.mxu0 0.0
      %1613 = vmatmul.mubr.f32.gmra.mrb[0].mxu0 %v1178
      %v1614 = vpop.f32.mrb[0].mxu0
      %v1615 = vadd.f32 0.0, %v1614
      %v1616 = vpop.f32.mrb[0].mxu0
      %1617 = vmatprep.mubr.f32.mxu0 0.0
      %1618 = vmatmul.mubr.f32.gmra.mrb[0].mxu0 %v1181
      %v1619 = vpop.f32.mrb[0].mxu0
      %v1620 = vadd.f32 0.0, %v1619
      %v1621 = vpop.f32.mrb[0].mxu0
      %1622 = vmatprep.mubr.f32.mxu0 0.0
      %1623 = vmatmul.mubr.f32.gmra.mrb[0].mxu0 %v1184
      %v1624 = vpop.f32.mrb[0].mxu0
      %v1625 = vadd.f32 0.0, %v1624
      %v1626 = vpop.f32.mrb[0].mxu0
      %1627 = vmatprep.mubr.f32.mxu0 0.0
      %1628 = vmatmul.mubr.f32.gmra.mrb[0].mxu0 %v1187
      %v1629 = vpop.f32.mrb[0].mxu0
      %v1630 = vadd.f32 0.0, %v1629
      %v1631 = vpop.f32.mrb[0].mxu0
      %1632 = vmatprep.mubr.f32.mxu0 0.0
      %1633 = vmatmul.mubr.f32.gmra.mrb[0].mxu0 %v1190
      %v1634 = vpop.f32.mrb[0].mxu0
      %v1635 = vadd.f32 0.0, %v1634
      %v1636 = vpop.f32.mrb[0].mxu0
      %1637 = vmatprep.mubr.f32.mxu0 0.0
      %1638 = vmatmul.mubr.f32.gmra.mrb[0].mxu0 %v1193
      %v1639 = vpop.f32.mrb[0].mxu0
      %v1640 = vadd.f32 0.0, %v1639
      %v1641 = vpop.f32.mrb[0].mxu0
      %1642 = vmatprep.mubr.f32.mxu0 0.0
      %1643 = vmatmul.mubr.f32.gmra.mrb[0].mxu0 %v1196
      %v1644 = vpop.f32.mrb[0].mxu0
      %v1645 = vadd.f32 0.0, %v1644
      %v1646 = vpop.f32.mrb[0].mxu0
      %1647 = vdwg.mxu0
      %v1648 = vmul.f32 %v627, %v1265
      %v1649 = vmul.f32 %v632, %v1270
      %v1650 = vmul.f32 %v637, %v1275
      %v1651 = vmul.f32 %v642, %v1280
      %v1652 = vmul.f32 %v647, %v1285
      %v1653 = vmul.f32 %v652, %v1290
      %v1654 = vmul.f32 %v657, %v1295
      %v1655 = vmul.f32 %v662, %v1300
      %v1656 = vmul.f32 %v667, %v1305
      %v1657 = vmul.f32 %v672, %v1310
      %v1658 = vmul.f32 %v677, %v1315
      %v1659 = vmul.f32 %v682, %v1320
      %v1660 = vmul.f32 %v687, %v1325
      %v1661 = vmul.f32 %v692, %v1330
      %v1662 = vmul.f32 %v697, %v1335
      %v1663 = vmul.f32 %v702, %v1340
      %v1664 = vmul.f32 %v707, %v1345
      %v1665 = vmul.f32 %v712, %v1350
      %v1666 = vmul.f32 %v717, %v1355
      %v1667 = vmul.f32 %v722, %v1360
      %v1668 = vmul.f32 %v727, %v1365
      %v1669 = vmul.f32 %v732, %v1370
      %v1670 = vmul.f32 %v737, %v1375
      %v1671 = vmul.f32 %v742, %v1380
      %v1672 = vmul.f32 %v747, %v1385
      %v1673 = vmul.f32 %v752, %v1390
      %v1674 = vmul.f32 %v757, %v1395
      %v1675 = vmul.f32 %v762, %v1400
      %v1676 = vmul.f32 %v767, %v1405
      %v1677 = vmul.f32 %v772, %v1410
      %v1678 = vmul.f32 %v777, %v1415
      %v1679 = vmul.f32 %v782, %v1420
      %v1680 = vadd.f32 %v1648, %v1490
      %v1681 = vadd.f32 %v1649, %v1495
      %v1682 = vadd.f32 %v1650, %v1500
      %v1683 = vadd.f32 %v1651, %v1505
      %v1684 = vadd.f32 %v1652, %v1510
      %v1685 = vadd.f32 %v1653, %v1515
      %v1686 = vadd.f32 %v1654, %v1520
      %v1687 = vadd.f32 %v1655, %v1525
      %v1688 = vadd.f32 %v1656, %v1530
      %v1689 = vadd.f32 %v1657, %v1535
      %v1690 = vadd.f32 %v1658, %v1540
      %v1691 = vadd.f32 %v1659, %v1545
      %v1692 = vadd.f32 %v1660, %v1550
      %v1693 = vadd.f32 %v1661, %v1555
      %v1694 = vadd.f32 %v1662, %v1560
      %v1695 = vadd.f32 %v1663, %v1565
      %v1696 = vadd.f32 %v1664, %v1570
      %v1697 = vadd.f32 %v1665, %v1575
      %v1698 = vadd.f32 %v1666, %v1580
      %v1699 = vadd.f32 %v1667, %v1585
      %v1700 = vadd.f32 %v1668, %v1590
      %v1701 = vadd.f32 %v1669, %v1595
      %v1702 = vadd.f32 %v1670, %v1600
      %v1703 = vadd.f32 %v1671, %v1605
      %v1704 = vadd.f32 %v1672, %v1610
      %v1705 = vadd.f32 %v1673, %v1615
      %v1706 = vadd.f32 %v1674, %v1620
      %v1707 = vadd.f32 %v1675, %v1625
      %v1708 = vadd.f32 %v1676, %v1630
      %v1709 = vadd.f32 %v1677, %v1635
      %v1710 = vadd.f32 %v1678, %v1640
      %v1711 = vadd.f32 %v1679, %v1645
      %vm1712 = vcmask 261120
      %1713 = vst.msk [vmem:[%s412] sm:$0xff] %vm1712, %v1680
      %1714 = vst.msk [vmem:[%s412 + $0x8] sm:$0xff] %vm1712, %v1681
      %1715 = vst.msk [vmem:[%s412 + $0x10] sm:$0xff] %vm1712, %v1682
      %1716 = vst.msk [vmem:[%s412 + $0x18] sm:$0xff] %vm1712, %v1683
      %1717 = vst.msk [vmem:[%s412 + $0x20] sm:$0xff] %vm1712, %v1684
      %1718 = vst.msk [vmem:[%s412 + $0x28] sm:$0xff] %vm1712, %v1685
      %1719 = vst.msk [vmem:[%s412 + $0x30] sm:$0xff] %vm1712, %v1686
      %1720 = vst.msk [vmem:[%s412 + $0x38] sm:$0xff] %vm1712, %v1687
      %1721 = vst.msk [vmem:[%s412 + $0x40] sm:$0xff] %vm1712, %v1688
      %1722 = vst.msk [vmem:[%s412 + $0x48] sm:$0xff] %vm1712, %v1689
      %1723 = vst.msk [vmem:[%s412 + $0x50] sm:$0xff] %vm1712, %v1690
      %1724 = vst.msk [vmem:[%s412 + $0x58] sm:$0xff] %vm1712, %v1691
      %1725 = vst.msk [vmem:[%s412 + $0x60] sm:$0xff] %vm1712, %v1692
      %1726 = vst.msk [vmem:[%s412 + $0x68] sm:$0xff] %vm1712, %v1693
      %1727 = vst.msk [vmem:[%s412 + $0x70] sm:$0xff] %vm1712, %v1694
      %1728 = vst.msk [vmem:[%s412 + $0x78] sm:$0xff] %vm1712, %v1695
      %1729 = vst.msk [vmem:[%s412 + $0x80] sm:$0xff] %vm1712, %v1696
      %1730 = vst.msk [vmem:[%s412 + $0x88] sm:$0xff] %vm1712, %v1697
      %1731 = vst.msk [vmem:[%s412 + $0x90] sm:$0xff] %vm1712, %v1698
      %1732 = vst.msk [vmem:[%s412 + $0x98] sm:$0xff] %vm1712, %v1699
      %1733 = vst.msk [vmem:[%s412 + $0xa0] sm:$0xff] %vm1712, %v1700
      %1734 = vst.msk [vmem:[%s412 + $0xa8] sm:$0xff] %vm1712, %v1701
      %1735 = vst.msk [vmem:[%s412 + $0xb0] sm:$0xff] %vm1712, %v1702
      %1736 = vst.msk [vmem:[%s412 + $0xb8] sm:$0xff] %vm1712, %v1703
      %1737 = vst.msk [vmem:[%s412 + $0xc0] sm:$0xff] %vm1712, %v1704
      %1738 = vst.msk [vmem:[%s412 + $0xc8] sm:$0xff] %vm1712, %v1705
      %1739 = vst.msk [vmem:[%s412 + $0xd0] sm:$0xff] %vm1712, %v1706
      %1740 = vst.msk [vmem:[%s412 + $0xd8] sm:$0xff] %vm1712, %v1707
      %1741 = vst.msk [vmem:[%s412 + $0xe0] sm:$0xff] %vm1712, %v1708
      %1742 = vst.msk [vmem:[%s412 + $0xe8] sm:$0xff] %vm1712, %v1709
      %1743 = vst.msk [vmem:[%s412 + $0xf0] sm:$0xff] %vm1712, %v1710
      %1744 = vst.msk [vmem:[%s412 + $0xf8] sm:$0xff] %vm1712, %v1711
      %s1745 = smul.u32 32, %s25
      %p1746 = scmp.lt.s32.totalorder %s24, 1
      %s1747 = scalar_select %p1746, %s24, 1
      %p1748 = scmp.lt.s32.totalorder %s1745, 31
      %s1749 = scalar_select %p1748, %s1745, 31
      %s1750 = smul.addr %s1747, 32
      %s1751 = sadd.s32 %s1749, %s1750
      %s1752 = smul.addr %s1751, 8
      %s1753 = scalar_lea.vmem %s9, %s1752
      // Predicated region
      $region57: #{tpu_custom_call.1} parent=55 // pred_check
        %p1754 = pneg %p258
      $region58: #{tpu_custom_call.1} parent=55 // pred_check_branch
        %1756 = sbr.rel (%p1754) target = $region60
      $region59: #{tpu_custom_call.1} parent=55 // pred_region
        %s1757 = smul.u32 32, %s25
      $region60: #{tpu_custom_call.1} parent=55 // pred_fallthru
        _
    $region56: #{tpu_custom_call.1} parent=5 // pred_fallthru
      _
    %p1758 = scmp.le.s32.totalorder 2, %s15
    // Predicated region
    $region61: #{tpu_custom_call.1} parent=5 // pred_check
      %p1759 = pneg %p1758
    $region62: #{tpu_custom_call.1} parent=5 // pred_check_branch
      %1761 = sbr.rel (%p1759) target = $region64
    $region63: #{tpu_custom_call.1} parent=5 // pred_region
      %s1762 = ssub.s32 %s15, 2
      // Predicated region
      $region65: #{tpu_custom_call.1} parent=63 // pred_check
        %p1763 = pneg %p264
      $region66: #{tpu_custom_call.1} parent=63 // pred_check_branch
        %1765 = sbr.rel (%p1763) target = $region68
      $region67: #{tpu_custom_call.1} parent=63 // pred_region
        %s1766 = smul.u32 32, %s27
        %p1767 = scmp.lt.s32.totalorder %s26, 1
        %s1768 = scalar_select %p1767, %s26, 1
        %p1769 = scmp.lt.s32.totalorder %s1766, 31
        %s1770 = scalar_select %p1769, %s1766, 31
        %s1771 = smul.addr %s1768, 32
        %s1772 = sadd.s32 %s1770, %s1771
        %s1773 = smul.addr %s1772, 8
        %s1774 = scalar_lea.vmem %s9, %s1773
      $region68: #{tpu_custom_call.1} parent=63 // pred_fallthru
        _
    $region64: #{tpu_custom_call.1} parent=5 // pred_fallthru
      _
  $region6: #{tpu_custom_call.1} parent=0 // loop_footer
    %s19 = sadd.s32 1, %s15
  $region7: #{tpu_custom_call.1} parent=0 // loop_footer_branch
    %14 = sbr.rel target = $region3
  $region8: #{tpu_custom_call.1} parent=0 // loop_exit
    _

</llo_original>
